<compile_context>
chip_gen: v5e
topology: v5e:2x2
jax: 0.10.0
libtpu: 0.0.40
codegen_flags: <defaults>
</compile_context>

<pallas_src>
import functools

import jax
import jax.numpy as jnp
from jax import lax
from jax.experimental import pallas as pl
from jax.experimental.pallas import tpu as pltpu

LANE = 128
_VPU_CIN_MAX = 16      # below this, do the 1x1 convs as unrolled VPU FMAs


def _round_up(x, m):
    return (x + m - 1) // m * m


def _silu(x):
    # silu(x) = x / (1 + exp(-x)); approx reciprocal runs on the EUP slot.
    return x * pl.reciprocal(1.0 + jnp.exp(-x), approx=True)


def _shar_kernel(rows, W, Cp, Cout,
                 xt_ref, xc_ref, xb_ref, w12_ref, b12_ref, w3_ref, b3_ref,
                 o_ref):
    t = pl.program_id(1)
    n_t = pl.num_programs(1)
    Cin = xc_ref.shape[-1]
    M2 = (rows + 2) * W          # core rows + 1-row halo above / below
    M = rows * W

    # ---- assemble the (rows+2) x W input window (halo rows, clamped) ----
    x_all = jnp.concatenate([xt_ref[0], xc_ref[0], xb_ref[0]], axis=0)
    x2d = x_all.reshape(M2, Cin)                        # f32 (M2, Cin)

    # ---- fused 1x1 convs: BaseConv (BN folded) + conv1_2, one pass ----
    if Cin <= _VPU_CIN_MAX:
        # Tiny K: unrolled VPU FMA — don't waste an MXU pass on K=Cin zeros.
        y12 = b12_ref[...] + x2d[:, 0:1] * w12_ref[0:1, :]
        for ci in range(1, Cin):
            y12 = y12 + x2d[:, ci:ci + 1] * w12_ref[ci:ci + 1, :]
    else:
        y12 = jnp.dot(x2d.astype(jnp.bfloat16), w12_ref[...],
                      preferred_element_type=jnp.float32) + b12_ref[...]
    x1 = _silu(y12[:, :Cp]).reshape(rows + 2, W, Cp)    # BaseConv branch, f32
    x2 = y12[W:W + M, Cp:]                              # plain 1x1 branch (core rows)

    # ---- zero the x1 halo rows that fall outside the image ----
    row_ids = lax.broadcasted_iota(jnp.int32, (rows + 2, 1, 1), 0)
    outside = ((row_ids == 0) & (t == 0)) | \
              ((row_ids == rows + 1) & (t == n_t - 1))
    x1 = jnp.where(outside, 0.0, x1).astype(jnp.bfloat16)   # bf16 BEFORE building operand

    # ---- 3x3 conv (stride 1, pad 1): one column-halo concat, then nine
    #      accumulated bf16 MXU matmuls (no im2col buffer) ----
    zcol = jnp.zeros((rows + 2, 1, Cp), jnp.bfloat16)
    xp = jnp.concatenate([zcol, x1, zcol], axis=1)      # (rows+2, W+2, Cp) bf16

    acc = x2 + b3_ref[...]                              # f32 (M, Cp) accumulator
    for k, (dy, dx) in enumerate([(dy, dx) for dy in range(3) for dx in range(3)]):
        lhs = xp[dy:dy + rows, dx:dx + W, :].reshape(M, Cp)
        acc = acc + jnp.dot(lhs, w3_ref[k * Cp:(k + 1) * Cp, :],
                            preferred_element_type=jnp.float32)

    # ---- SiLU(conv2(x1) + x2); store only the real Cout channels ----
    o_ref[...] = _silu(acc)[:, :Cout].reshape(1, rows, W, Cout)


def shar_layer_pallas(x_nhwc, params, *, rows_block=8):
    """x_nhwc: (N, H, W, Cin) float32. Returns (N, H, W, Cout) float32."""
    N, H, W, Cin = x_nhwc.shape
    Cout = params["w1"].shape[1]
    Cout_p = _round_up(Cout, LANE)
    assert H % rows_block == 0, "rows_block must divide H"
    n_row_tiles = H // rows_block

    # Fold eval-mode BN into the BaseConv 1x1 weight; fuse both 1x1 convs into
    # one (Cin, 2*Cout_p) weight + (1, 2*Cout_p) bias (columns split in-kernel).
    w1_folded = params["w1"] * params["bn_scale"]                  # (Cin, Cout)
    w12 = jnp.zeros((Cin, 2 * Cout_p), jnp.float32)
    w12 = w12.at[:, :Cout].set(w1_folded)
    w12 = w12.at[:, Cout_p:Cout_p + Cout].set(params["w2"])
    b12 = jnp.zeros((1, 2 * Cout_p), jnp.float32)
    b12 = b12.at[:, :Cout].set(params["bn_bias"])
    b12 = b12.at[:, Cout_p:Cout_p + Cout].set(params["b2"])
    if Cin > _VPU_CIN_MAX:
        w12 = w12.astype(jnp.bfloat16)                             # MXU path

    # 3x3 weight -> 9 stacked (Cout_p, Cout_p) bf16 blocks, (dy, dx) row-major.
    w3 = jnp.zeros((3, 3, Cout_p, Cout_p), jnp.float32)
    w3 = w3.at[:, :, :Cout, :Cout].set(params["w3"])
    w3 = w3.reshape(9 * Cout_p, Cout_p).astype(jnp.bfloat16)
    b3 = jnp.zeros((1, Cout_p), jnp.float32).at[:, :Cout].set(params["b3"])

    kernel = functools.partial(_shar_kernel, rows_block, W, Cout_p, Cout)

    # Halo rows come from the SAME input array via two extra height-1 blocks
    # with clamped, data-independent index maps (block height 1 => block index
    # == row index).  Boundary-tile halos are zeroed inside the kernel.
    top_map = lambda n, t: (n, jnp.maximum(t * rows_block - 1, 0), 0, 0)
    bot_map = lambda n, t: (n, jnp.minimum((t + 1) * rows_block, H - 1), 0, 0)

    grid_spec = pltpu.PrefetchScalarGridSpec(
        num_scalar_prefetch=0,
        grid=(N, n_row_tiles),
        in_specs=[
            pl.BlockSpec((1, 1, W, Cin), top_map),                          # halo row above
            pl.BlockSpec((1, rows_block, W, Cin), lambda n, t: (n, t, 0, 0)),  # core rows
            pl.BlockSpec((1, 1, W, Cin), bot_map),                          # halo row below
            pl.BlockSpec((Cin, 2 * Cout_p), lambda n, t: (0, 0)),           # fused 1x1 weight
            pl.BlockSpec((1, 2 * Cout_p), lambda n, t: (0, 0)),             # fused 1x1 bias
            pl.BlockSpec((9 * Cout_p, Cout_p), lambda n, t: (0, 0)),        # 3x3 weight
            pl.BlockSpec((1, Cout_p), lambda n, t: (0, 0)),                 # 3x3 bias
        ],
        out_specs=pl.BlockSpec((1, rows_block, W, Cout),
                               lambda n, t: (n, t, 0, 0)),
    )

    return pl.pallas_call(
        kernel,
        out_shape=jax.ShapeDtypeStruct((N, H, W, Cout), jnp.float32),
        grid_spec=grid_spec,
        compiler_params=pltpu.CompilerParams(
            dimension_semantics=("parallel", "parallel"),
            vmem_limit_bytes=48 * 1024 * 1024),
    )(x_nhwc, x_nhwc, x_nhwc, w12, b12, w3, b3)


def make_params(key, in_channels, out_channels):
    """Deterministic synthetic parameters matching shar_layer.__init__."""
    k1, k2, k3, k4, k5 = jax.random.split(key, 5)
    # BaseConv: Conv2d(Cin, Cout, 1, bias=False) + BatchNorm2d(Cout) + SiLU
    w1_pt = jax.random.normal(k1, (out_channels, in_channels, 1, 1), jnp.float32) * 0.1
    eps = 1e-3   # fresh BN (eval): gamma=1, beta=0, mean=0, var=1
    bn_scale = jnp.ones((out_channels,), jnp.float32) / jnp.sqrt(1.0 + eps)
    bn_bias = jnp.zeros((out_channels,), jnp.float32)
    # conv1_2: Conv2d(Cin, Cout, 1) with bias
    w2_pt = jax.random.normal(k2, (out_channels, in_channels, 1, 1), jnp.float32) * 0.1
    b2 = jax.random.normal(k3, (out_channels,), jnp.float32) * 0.1
    # conv2: Conv2d(Cout, Cout, 3, padding=1) with bias
    w3_pt = jax.random.normal(k4, (out_channels, out_channels, 3, 3), jnp.float32) * 0.1
    b3 = jax.random.normal(k5, (out_channels,), jnp.float32) * 0.1

    return {
        "w1": jnp.transpose(w1_pt[:, :, 0, 0], (1, 0)),        # (Cin, Cout)
        "bn_scale": bn_scale.reshape(1, out_channels),
        "bn_bias": bn_bias.reshape(1, out_channels),
        "w2": jnp.transpose(w2_pt[:, :, 0, 0], (1, 0)),        # (Cin, Cout)
        "b2": b2.reshape(1, out_channels),
        "w3": jnp.transpose(w3_pt, (2, 3, 1, 0)),              # (kh, kw, Cin, Cout)
        "b3": b3.reshape(1, out_channels),
    }


def shar_layer_reference(x_nhwc, params):
    """Pure-JAX f32 reference (lax convs) for correctness checking."""
    dn = jax.lax.conv_dimension_numbers(x_nhwc.shape, (1, 1, 1, 1),
                                        ("NHWC", "HWIO", "NHWC"))
    w1 = params["w1"][None, None]
    w2 = params["w2"][None, None]
    x1 = jax.lax.conv_general_dilated(x_nhwc, w1, (1, 1), "VALID",
                                      dimension_numbers=dn)
    x1 = jax.nn.silu(x1 * params["bn_scale"] + params["bn_bias"])
    x2 = jax.lax.conv_general_dilated(x_nhwc, w2, (1, 1), "VALID",
                                      dimension_numbers=dn) + params["b2"]
    dn3 = jax.lax.conv_dimension_numbers(x1.shape, params["w3"].shape,
                                         ("NHWC", "HWIO", "NHWC"))
    x1 = jax.lax.conv_general_dilated(x1, params["w3"], (1, 1), "SAME",
                                      dimension_numbers=dn3) + params["b3"]
    return jax.nn.silu(x1 + x2)


if __name__ == "__main__":
    N, Cin, Cout, H, W = 2, 4, 8, 16, 16   # expansion unused in forward

    key = jax.random.PRNGKey(0)
    kx, kp = jax.random.split(key)
    x_nchw = jax.random.normal(kx, (N, Cin, H, W), jnp.float32)   # PyTorch layout
    x_nhwc = jnp.transpose(x_nchw, (0, 2, 3, 1))                  # kernel layout

    params = make_params(kp, Cin, Cout)

    out = shar_layer_pallas(x_nhwc, params, rows_block=8)
    out = jax.block_until_ready(out)

    ref = shar_layer_reference(x_nhwc, params)
    assert out.shape == (N, H, W, Cout)
    max_err = jnp.max(jnp.abs(out - ref))
    # bf16 MXU operands for the 3x3 conv + approx-reciprocal SiLU.
    assert jnp.allclose(out, ref, atol=3e-2, rtol=3e-2), \
        f"max abs err = {max_err}"

    print("KERNEL_OK")
</pallas_src>

<mosaic_0001>
module attributes {stable_mosaic.version = 11 : i64} {
  func.func @_shar_kernel(%arg0: i32, %arg1: i32, %arg2: memref<1x1x16x4xf32, #tpu.memory_space<vmem>>, %arg3: memref<1x8x16x4xf32, #tpu.memory_space<vmem>>, %arg4: memref<1x1x16x4xf32, #tpu.memory_space<vmem>>, %arg5: memref<4x256xf32, #tpu.memory_space<vmem>>, %arg6: memref<1x256xf32, #tpu.memory_space<vmem>>, %arg7: memref<1152x128xbf16, #tpu.memory_space<vmem>>, %arg8: memref<1x128xf32, #tpu.memory_space<vmem>>, %arg9: memref<1x8x16x8xf32, #tpu.memory_space<vmem>>) attributes {dimension_semantics = [#tpu.dimension_semantics<parallel>, #tpu.dimension_semantics<parallel>], iteration_bounds = array<i64: 2, 2>, scalar_prefetch = 0 : i64, scratch_operands = 0 : i64, tpu.core_type = #tpu.core_type<tc>, window_params = [{transform_indices = @transform_0, window_bounds = array<i64: 1, 1, 16, 4>}, {transform_indices = @transform_1, window_bounds = array<i64: 1, 8, 16, 4>}, {transform_indices = @transform_2, window_bounds = array<i64: 1, 1, 16, 4>}, {pipeline_mode = #tpu.pipeline_mode<synchronous>, transform_indices = @transform_3, window_bounds = array<i64: 4, 256>}, {pipeline_mode = #tpu.pipeline_mode<synchronous>, transform_indices = @transform_4, window_bounds = array<i64: 1, 256>}, {pipeline_mode = #tpu.pipeline_mode<synchronous>, transform_indices = @transform_5, window_bounds = array<i64: 1152, 128>}, {pipeline_mode = #tpu.pipeline_mode<synchronous>, transform_indices = @transform_6, window_bounds = array<i64: 1, 128>}, {transform_indices = @transform_7, window_bounds = array<i64: 1, 8, 16, 8>}]} {
    %c0 = arith.constant 0 : index
    %c0_0 = arith.constant 0 : index
    %c0_1 = arith.constant 0 : index
    %c0_2 = arith.constant 0 : index
    %0 = vector.load %arg2[%c0, %c0_0, %c0_1, %c0_2] : memref<1x1x16x4xf32, #tpu.memory_space<vmem>>, vector<1x1x16x4xf32>
    %1 = vector.shape_cast %0 : vector<1x1x16x4xf32> to vector<1x16x4xf32>
    %c0_3 = arith.constant 0 : index
    %c0_4 = arith.constant 0 : index
    %c0_5 = arith.constant 0 : index
    %c0_6 = arith.constant 0 : index
    %2 = vector.load %arg3[%c0_3, %c0_4, %c0_5, %c0_6] : memref<1x8x16x4xf32, #tpu.memory_space<vmem>>, vector<1x8x16x4xf32>
    %3 = vector.shape_cast %2 : vector<1x8x16x4xf32> to vector<8x16x4xf32>
    %c0_7 = arith.constant 0 : index
    %c0_8 = arith.constant 0 : index
    %c0_9 = arith.constant 0 : index
    %c0_10 = arith.constant 0 : index
    %4 = vector.load %arg4[%c0_7, %c0_8, %c0_9, %c0_10] : memref<1x1x16x4xf32, #tpu.memory_space<vmem>>, vector<1x1x16x4xf32>
    %5 = vector.shape_cast %4 : vector<1x1x16x4xf32> to vector<1x16x4xf32>
    %6 = tpu.concatenate %1, %3, %5 in 0 : vector<1x16x4xf32>, vector<8x16x4xf32>, vector<1x16x4xf32> -> vector<10x16x4xf32>
    %7 = vector.shape_cast %6 : vector<10x16x4xf32> to vector<160x4xf32>
    %c0_11 = arith.constant 0 : index
    %c0_12 = arith.constant 0 : index
    %8 = vector.load %arg6[%c0_11, %c0_12] : memref<1x256xf32, #tpu.memory_space<vmem>>, vector<1x256xf32>
    %9 = vector.extract_strided_slice %7 {offsets = [0, 0], sizes = [160, 1], strides = [1, 1]} : vector<160x4xf32> to vector<160x1xf32>
    %c0_13 = arith.constant 0 : index
    %c0_14 = arith.constant 0 : index
    %10 = vector.load %arg5[%c0_13, %c0_14] : memref<4x256xf32, #tpu.memory_space<vmem>>, vector<1x256xf32>
    %11 = vector.broadcast %9 : vector<160x1xf32> to vector<160x256xf32>
    %12 = vector.broadcast %10 : vector<1x256xf32> to vector<160x256xf32>
    %13 = arith.mulf %11, %12 : vector<160x256xf32>
    %14 = vector.broadcast %8 : vector<1x256xf32> to vector<160x256xf32>
    %15 = arith.addf %14, %13 : vector<160x256xf32>
    %16 = vector.extract_strided_slice %7 {offsets = [0, 1], sizes = [160, 1], strides = [1, 1]} : vector<160x4xf32> to vector<160x1xf32>
    %c1 = arith.constant 1 : index
    %c0_15 = arith.constant 0 : index
    %17 = vector.load %arg5[%c1, %c0_15] : memref<4x256xf32, #tpu.memory_space<vmem>>, vector<1x256xf32>
    %18 = vector.broadcast %16 : vector<160x1xf32> to vector<160x256xf32>
    %19 = vector.broadcast %17 : vector<1x256xf32> to vector<160x256xf32>
    %20 = arith.mulf %18, %19 : vector<160x256xf32>
    %21 = arith.addf %15, %20 : vector<160x256xf32>
    %22 = vector.extract_strided_slice %7 {offsets = [0, 2], sizes = [160, 1], strides = [1, 1]} : vector<160x4xf32> to vector<160x1xf32>
    %c2 = arith.constant 2 : index
    %c0_16 = arith.constant 0 : index
    %23 = vector.load %arg5[%c2, %c0_16] : memref<4x256xf32, #tpu.memory_space<vmem>>, vector<1x256xf32>
    %24 = vector.broadcast %22 : vector<160x1xf32> to vector<160x256xf32>
    %25 = vector.broadcast %23 : vector<1x256xf32> to vector<160x256xf32>
    %26 = arith.mulf %24, %25 : vector<160x256xf32>
    %27 = arith.addf %21, %26 : vector<160x256xf32>
    %28 = vector.extract_strided_slice %7 {offsets = [0, 3], sizes = [160, 1], strides = [1, 1]} : vector<160x4xf32> to vector<160x1xf32>
    %c3 = arith.constant 3 : index
    %c0_17 = arith.constant 0 : index
    %29 = vector.load %arg5[%c3, %c0_17] : memref<4x256xf32, #tpu.memory_space<vmem>>, vector<1x256xf32>
    %30 = vector.broadcast %28 : vector<160x1xf32> to vector<160x256xf32>
    %31 = vector.broadcast %29 : vector<1x256xf32> to vector<160x256xf32>
    %32 = arith.mulf %30, %31 : vector<160x256xf32>
    %33 = arith.addf %27, %32 : vector<160x256xf32>
    %34 = vector.extract_strided_slice %33 {offsets = [0, 0], sizes = [160, 128], strides = [1, 1]} : vector<160x256xf32> to vector<160x128xf32>
    %cst = arith.constant 0.000000e+00 : f32
    %35 = vector.broadcast %cst : f32 to vector<160x128xf32>
    %36 = arith.subf %35, %34 : vector<160x128xf32>
    %37 = math.exp %36 : vector<160x128xf32>
    %cst_18 = arith.constant 1.000000e+00 : f32
    %38 = vector.broadcast %cst_18 : f32 to vector<160x128xf32>
    %39 = arith.addf %38, %37 : vector<160x128xf32>
    %40 = tpu.reciprocal %39 {approx = true} : vector<160x128xf32> -> vector<160x128xf32>
    %41 = arith.mulf %34, %40 : vector<160x128xf32>
    %42 = vector.shape_cast %41 : vector<160x128xf32> to vector<10x16x128xf32>
    %43 = vector.extract_strided_slice %33 {offsets = [16, 128], sizes = [128, 128], strides = [1, 1]} : vector<160x256xf32> to vector<128x128xf32>
    %44 = tpu.iota {dimensions = array<i32: 0>} : vector<10x1x1xi32>
    %c0_i32 = arith.constant 0 : i32
    %45 = vector.broadcast %c0_i32 : i32 to vector<10x1x1xi32>
    %46 = arith.cmpi eq, %44, %45 : vector<10x1x1xi32>
    %c0_i32_19 = arith.constant 0 : i32
    %47 = arith.cmpi eq, %arg1, %c0_i32_19 : i32
    %48 = vector.broadcast %47 : i1 to vector<10x1x1xi1>
    %49 = arith.andi %46, %48 : vector<10x1x1xi1>
    %c9_i32 = arith.constant 9 : i32
    %50 = vector.broadcast %c9_i32 : i32 to vector<10x1x1xi32>
    %51 = arith.cmpi eq, %44, %50 : vector<10x1x1xi32>
    %c1_i32 = arith.constant 1 : i32
    %52 = arith.cmpi eq, %arg1, %c1_i32 : i32
    %53 = vector.broadcast %52 : i1 to vector<10x1x1xi1>
    %54 = arith.andi %51, %53 : vector<10x1x1xi1>
    %55 = arith.ori %49, %54 : vector<10x1x1xi1>
    %cst_20 = arith.constant 0.000000e+00 : f32
    %56 = vector.shape_cast %55 : vector<10x1x1xi1> to vector<10x1x1xi1>
    %57 = vector.broadcast %56 : vector<10x1x1xi1> to vector<10x16x128xi1>
    %58 = vector.broadcast %cst_20 : f32 to vector<10x16x128xf32>
    %59 = arith.select %57, %58, %42 : vector<10x16x128xi1>, vector<10x16x128xf32>
    %60 = arith.truncf %59 : vector<10x16x128xf32> to vector<10x16x128xbf16>
    %cst_21 = arith.constant 0.000000e+00 : bf16
    %61 = vector.broadcast %cst_21 : bf16 to vector<10x1x128xbf16>
    %62 = tpu.concatenate %61, %60, %61 in 1 : vector<10x1x128xbf16>, vector<10x16x128xbf16>, vector<10x1x128xbf16> -> vector<10x18x128xbf16>
    %c0_22 = arith.constant 0 : index
    %c0_23 = arith.constant 0 : index
    %63 = vector.load %arg8[%c0_22, %c0_23] : memref<1x128xf32, #tpu.memory_space<vmem>>, vector<1x128xf32>
    %64 = vector.broadcast %63 : vector<1x128xf32> to vector<128x128xf32>
    %65 = arith.addf %43, %64 : vector<128x128xf32>
    %66 = vector.extract_strided_slice %62 {offsets = [0, 0, 0], sizes = [8, 16, 128], strides = [1, 1, 1]} : vector<10x18x128xbf16> to vector<8x16x128xbf16>
    %67 = vector.shape_cast %66 : vector<8x16x128xbf16> to vector<128x128xbf16>
    %c0_24 = arith.constant 0 : index
    %c0_25 = arith.constant 0 : index
    %68 = vector.load %arg7[%c0_24, %c0_25] : memref<1152x128xbf16, #tpu.memory_space<vmem>>, vector<128x128xbf16>
    %cst_26 = arith.constant dense<0.000000e+00> : vector<128x128xf32>
    %69 = tpu.matmul %67, %68, %cst_26 {dimension_numbers = #tpu.dot_dimension_numbers<[1], [0], [0], [1], [0, 0, 1, 1], [], []>} : vector<128x128xbf16>, vector<128x128xbf16>, vector<128x128xf32> -> vector<128x128xf32>
    %70 = arith.addf %65, %69 : vector<128x128xf32>
    %71 = vector.extract_strided_slice %62 {offsets = [0, 1, 0], sizes = [8, 16, 128], strides = [1, 1, 1]} : vector<10x18x128xbf16> to vector<8x16x128xbf16>
    %72 = vector.shape_cast %71 : vector<8x16x128xbf16> to vector<128x128xbf16>
    %c128 = arith.constant 128 : index
    %c0_27 = arith.constant 0 : index
    %73 = vector.load %arg7[%c128, %c0_27] : memref<1152x128xbf16, #tpu.memory_space<vmem>>, vector<128x128xbf16>
    %cst_28 = arith.constant dense<0.000000e+00> : vector<128x128xf32>
    %74 = tpu.matmul %72, %73, %cst_28 {dimension_numbers = #tpu.dot_dimension_numbers<[1], [0], [0], [1], [0, 0, 1, 1], [], []>} : vector<128x128xbf16>, vector<128x128xbf16>, vector<128x128xf32> -> vector<128x128xf32>
    %75 = arith.addf %70, %74 : vector<128x128xf32>
    %76 = vector.extract_strided_slice %62 {offsets = [0, 2, 0], sizes = [8, 16, 128], strides = [1, 1, 1]} : vector<10x18x128xbf16> to vector<8x16x128xbf16>
    %77 = vector.shape_cast %76 : vector<8x16x128xbf16> to vector<128x128xbf16>
    %c256 = arith.constant 256 : index
    %c0_29 = arith.constant 0 : index
    %78 = vector.load %arg7[%c256, %c0_29] : memref<1152x128xbf16, #tpu.memory_space<vmem>>, vector<128x128xbf16>
    %cst_30 = arith.constant dense<0.000000e+00> : vector<128x128xf32>
    %79 = tpu.matmul %77, %78, %cst_30 {dimension_numbers = #tpu.dot_dimension_numbers<[1], [0], [0], [1], [0, 0, 1, 1], [], []>} : vector<128x128xbf16>, vector<128x128xbf16>, vector<128x128xf32> -> vector<128x128xf32>
    %80 = arith.addf %75, %79 : vector<128x128xf32>
    %81 = vector.extract_strided_slice %62 {offsets = [1, 0, 0], sizes = [8, 16, 128], strides = [1, 1, 1]} : vector<10x18x128xbf16> to vector<8x16x128xbf16>
    %82 = vector.shape_cast %81 : vector<8x16x128xbf16> to vector<128x128xbf16>
    %c384 = arith.constant 384 : index
    %c0_31 = arith.constant 0 : index
    %83 = vector.load %arg7[%c384, %c0_31] : memref<1152x128xbf16, #tpu.memory_space<vmem>>, vector<128x128xbf16>
    %cst_32 = arith.constant dense<0.000000e+00> : vector<128x128xf32>
    %84 = tpu.matmul %82, %83, %cst_32 {dimension_numbers = #tpu.dot_dimension_numbers<[1], [0], [0], [1], [0, 0, 1, 1], [], []>} : vector<128x128xbf16>, vector<128x128xbf16>, vector<128x128xf32> -> vector<128x128xf32>
    %85 = arith.addf %80, %84 : vector<128x128xf32>
    %86 = vector.extract_strided_slice %62 {offsets = [1, 1, 0], sizes = [8, 16, 128], strides = [1, 1, 1]} : vector<10x18x128xbf16> to vector<8x16x128xbf16>
    %87 = vector.shape_cast %86 : vector<8x16x128xbf16> to vector<128x128xbf16>
    %c512 = arith.constant 512 : index
    %c0_33 = arith.constant 0 : index
    %88 = vector.load %arg7[%c512, %c0_33] : memref<1152x128xbf16, #tpu.memory_space<vmem>>, vector<128x128xbf16>
    %cst_34 = arith.constant dense<0.000000e+00> : vector<128x128xf32>
    %89 = tpu.matmul %87, %88, %cst_34 {dimension_numbers = #tpu.dot_dimension_numbers<[1], [0], [0], [1], [0, 0, 1, 1], [], []>} : vector<128x128xbf16>, vector<128x128xbf16>, vector<128x128xf32> -> vector<128x128xf32>
    %90 = arith.addf %85, %89 : vector<128x128xf32>
    %91 = vector.extract_strided_slice %62 {offsets = [1, 2, 0], sizes = [8, 16, 128], strides = [1, 1, 1]} : vector<10x18x128xbf16> to vector<8x16x128xbf16>
    %92 = vector.shape_cast %91 : vector<8x16x128xbf16> to vector<128x128xbf16>
    %c640 = arith.constant 640 : index
    %c0_35 = arith.constant 0 : index
    %93 = vector.load %arg7[%c640, %c0_35] : memref<1152x128xbf16, #tpu.memory_space<vmem>>, vector<128x128xbf16>
    %cst_36 = arith.constant dense<0.000000e+00> : vector<128x128xf32>
    %94 = tpu.matmul %92, %93, %cst_36 {dimension_numbers = #tpu.dot_dimension_numbers<[1], [0], [0], [1], [0, 0, 1, 1], [], []>} : vector<128x128xbf16>, vector<128x128xbf16>, vector<128x128xf32> -> vector<128x128xf32>
    %95 = arith.addf %90, %94 : vector<128x128xf32>
    %96 = vector.extract_strided_slice %62 {offsets = [2, 0, 0], sizes = [8, 16, 128], strides = [1, 1, 1]} : vector<10x18x128xbf16> to vector<8x16x128xbf16>
    %97 = vector.shape_cast %96 : vector<8x16x128xbf16> to vector<128x128xbf16>
    %c768 = arith.constant 768 : index
    %c0_37 = arith.constant 0 : index
    %98 = vector.load %arg7[%c768, %c0_37] : memref<1152x128xbf16, #tpu.memory_space<vmem>>, vector<128x128xbf16>
    %cst_38 = arith.constant dense<0.000000e+00> : vector<128x128xf32>
    %99 = tpu.matmul %97, %98, %cst_38 {dimension_numbers = #tpu.dot_dimension_numbers<[1], [0], [0], [1], [0, 0, 1, 1], [], []>} : vector<128x128xbf16>, vector<128x128xbf16>, vector<128x128xf32> -> vector<128x128xf32>
    %100 = arith.addf %95, %99 : vector<128x128xf32>
    %101 = vector.extract_strided_slice %62 {offsets = [2, 1, 0], sizes = [8, 16, 128], strides = [1, 1, 1]} : vector<10x18x128xbf16> to vector<8x16x128xbf16>
    %102 = vector.shape_cast %101 : vector<8x16x128xbf16> to vector<128x128xbf16>
    %c896 = arith.constant 896 : index
    %c0_39 = arith.constant 0 : index
    %103 = vector.load %arg7[%c896, %c0_39] : memref<1152x128xbf16, #tpu.memory_space<vmem>>, vector<128x128xbf16>
    %cst_40 = arith.constant dense<0.000000e+00> : vector<128x128xf32>
    %104 = tpu.matmul %102, %103, %cst_40 {dimension_numbers = #tpu.dot_dimension_numbers<[1], [0], [0], [1], [0, 0, 1, 1], [], []>} : vector<128x128xbf16>, vector<128x128xbf16>, vector<128x128xf32> -> vector<128x128xf32>
    %105 = arith.addf %100, %104 : vector<128x128xf32>
    %106 = vector.extract_strided_slice %62 {offsets = [2, 2, 0], sizes = [8, 16, 128], strides = [1, 1, 1]} : vector<10x18x128xbf16> to vector<8x16x128xbf16>
    %107 = vector.shape_cast %106 : vector<8x16x128xbf16> to vector<128x128xbf16>
    %c1024 = arith.constant 1024 : index
    %c0_41 = arith.constant 0 : index
    %108 = vector.load %arg7[%c1024, %c0_41] : memref<1152x128xbf16, #tpu.memory_space<vmem>>, vector<128x128xbf16>
    %cst_42 = arith.constant dense<0.000000e+00> : vector<128x128xf32>
    %109 = tpu.matmul %107, %108, %cst_42 {dimension_numbers = #tpu.dot_dimension_numbers<[1], [0], [0], [1], [0, 0, 1, 1], [], []>} : vector<128x128xbf16>, vector<128x128xbf16>, vector<128x128xf32> -> vector<128x128xf32>
    %110 = arith.addf %105, %109 : vector<128x128xf32>
    %cst_43 = arith.constant 0.000000e+00 : f32
    %111 = vector.broadcast %cst_43 : f32 to vector<128x128xf32>
    %112 = arith.subf %111, %110 : vector<128x128xf32>
    %113 = math.exp %112 : vector<128x128xf32>
    %cst_44 = arith.constant 1.000000e+00 : f32
    %114 = vector.broadcast %cst_44 : f32 to vector<128x128xf32>
    %115 = arith.addf %114, %113 : vector<128x128xf32>
    %116 = tpu.reciprocal %115 {approx = true} : vector<128x128xf32> -> vector<128x128xf32>
    %117 = arith.mulf %110, %116 : vector<128x128xf32>
    %118 = vector.extract_strided_slice %117 {offsets = [0, 0], sizes = [128, 8], strides = [1, 1]} : vector<128x128xf32> to vector<128x8xf32>
    %119 = vector.shape_cast %118 : vector<128x8xf32> to vector<1x8x16x8xf32>
    %c0_45 = arith.constant 0 : index
    %c0_46 = arith.constant 0 : index
    %c0_47 = arith.constant 0 : index
    %c0_48 = arith.constant 0 : index
    %120 = vector.load %arg9[%c0_45, %c0_46, %c0_47, %c0_48] : memref<1x8x16x8xf32, #tpu.memory_space<vmem>>, vector<1x8x16x8xf32>
    tpu.vector_store %arg9[%c0_45, %c0_46, %c0_47, %c0_48], %119 {strides = array<i32>} : memref<1x8x16x8xf32, #tpu.memory_space<vmem>>, vector<1x8x16x8xf32>,
    return
  }
  func.func @transform_0(%arg0: i32, %arg1: i32) -> (i32, i32, i32, i32) {
    %c8_i32 = arith.constant 8 : i32
    %0 = arith.muli %arg1, %c8_i32 : i32
    %c1_i32 = arith.constant 1 : i32
    %1 = arith.subi %0, %c1_i32 : i32
    %c0_i32 = arith.constant 0 : i32
    %2 = arith.maxsi %1, %c0_i32 : i32
    %c0_i32_0 = arith.constant 0 : i32
    %c0_i32_1 = arith.constant 0 : i32
    %c0_i32_2 = arith.constant 0 : i32
    return %arg0, %2, %c0_i32_0, %c0_i32_1 : i32, i32, i32, i32
  }
  func.func @transform_1(%arg0: i32, %arg1: i32) -> (i32, i32, i32, i32) {
    %c0_i32 = arith.constant 0 : i32
    %c0_i32_0 = arith.constant 0 : i32
    %c0_i32_1 = arith.constant 0 : i32
    return %arg0, %arg1, %c0_i32, %c0_i32_0 : i32, i32, i32, i32
  }
  func.func @transform_2(%arg0: i32, %arg1: i32) -> (i32, i32, i32, i32) {
    %c1_i32 = arith.constant 1 : i32
    %0 = arith.addi %arg1, %c1_i32 : i32
    %c8_i32 = arith.constant 8 : i32
    %1 = arith.muli %0, %c8_i32 : i32
    %c15_i32 = arith.constant 15 : i32
    %2 = arith.minsi %1, %c15_i32 : i32
    %c0_i32 = arith.constant 0 : i32
    %c0_i32_0 = arith.constant 0 : i32
    %c0_i32_1 = arith.constant 0 : i32
    return %arg0, %2, %c0_i32, %c0_i32_0 : i32, i32, i32, i32
  }
  func.func @transform_3(%arg0: i32, %arg1: i32) -> (i32, i32) {
    %c0_i32 = arith.constant 0 : i32
    %c0_i32_0 = arith.constant 0 : i32
    %c0_i32_1 = arith.constant 0 : i32
    return %c0_i32, %c0_i32_0 : i32, i32
  }
  func.func @transform_4(%arg0: i32, %arg1: i32) -> (i32, i32) {
    %c0_i32 = arith.constant 0 : i32
    %c0_i32_0 = arith.constant 0 : i32
    %c0_i32_1 = arith.constant 0 : i32
    return %c0_i32, %c0_i32_0 : i32, i32
  }
  func.func @transform_5(%arg0: i32, %arg1: i32) -> (i32, i32) {
    %c0_i32 = arith.constant 0 : i32
    %c0_i32_0 = arith.constant 0 : i32
    %c0_i32_1 = arith.constant 0 : i32
    return %c0_i32, %c0_i32_0 : i32, i32
  }
  func.func @transform_6(%arg0: i32, %arg1: i32) -> (i32, i32) {
    %c0_i32 = arith.constant 0 : i32
    %c0_i32_0 = arith.constant 0 : i32
    %c0_i32_1 = arith.constant 0 : i32
    return %c0_i32, %c0_i32_0 : i32, i32
  }
  func.func @transform_7(%arg0: i32, %arg1: i32) -> (i32, i32, i32, i32) {
    %c0_i32 = arith.constant 0 : i32
    %c0_i32_0 = arith.constant 0 : i32
    %c0_i32_1 = arith.constant 0 : i32
    return %arg0, %arg1, %c0_i32, %c0_i32_0 : i32, i32, i32, i32
  }
}

</mosaic_0001>

<llo_original>
// kernel: tpu_custom_call.1
$region0: #{tpu_custom_call.1}
  #allocation0 [shape = 'u32[]', space=smem, size = 0x4, offset = 0x4, fixed_abs, tag = 'smem constant byte address 0x4 - core index']
  #allocation1 [shape = 'u32[72,128]{1,0:T(1,128)}', space=vmem, size = 0x9000, scoped, tag = 'internal scratch']
  %s0 = inlined_call_operand.vmem [shape: f32[2,16,16,4], index: 0, kind: input, shape index: {}]
  %s1 = inlined_call_operand.vmem [shape: f32[2,16,16,4], index: 1, kind: input, shape index: {}]
  %s2 = inlined_call_operand.vmem [shape: f32[2,16,16,4], index: 2, kind: input, shape index: {}]
  %s3 = inlined_call_operand.vmem [shape: f32[4,256], index: 3, kind: input, shape index: {}]
  %s4 = inlined_call_operand.vmem [shape: f32[1,256], index: 4, kind: input, shape index: {}]
  %s5 = inlined_call_operand.vmem [shape: bf16[1152,128], index: 5, kind: input, shape index: {}]
  %s6 = inlined_call_operand.vmem [shape: f32[1,128], index: 6, kind: input, shape index: {}]
  %s7 = inlined_call_operand.vmem [shape: f32[2,16,16,8], index: 7, kind: output, shape index: {}]
  %s8 = sld [smem:[#allocation0]]
  $region61: #{tpu_custom_call.1} parent=0
    _
  %s10 = ssub.s32 1, %s8
  %s11 = scalar_select 0, %s10, %s8
  loop: start=0, step=1, limit=6
  $region2: #{tpu_custom_call.1} parent=0 // loop_pre_header
    _
  $region3: #{tpu_custom_call.1} parent=0 // loop_header
    %s13 = sphi 0, %s17
    %p14 = scmp.ge.s32.totalorder %s13, 6
    %s20 = sphi 0, %s32
    %s21 = sphi 0, %s28
    %s22 = sphi 0, %s20
    %s23 = sphi 0, %s21
    %s24 = sphi 0, %s22
    %s25 = sphi 0, %s23
    %s45 = sphi 0, %s47
    %s48 = sphi 0, %s45
    %s49 = sphi 0, %s48
    %s65 = sphi 0, %s49
    %s73 = sphi 0, %s75
    %s76 = sphi 0, %s73
    %s77 = sphi 0, %s76
    %s93 = sphi 0, %s77
    %s109 = sphi 0, %s111
    %s112 = sphi 0, %s109
    %s113 = sphi 0, %s112
    %s129 = sphi 0, %s113
    %s133 = sphi 0, %s133
    %s135 = sphi 0, %s133
    %s136 = sphi 0, %s135
    %s150 = sphi 0, %s136
    %s154 = sphi 0, %s154
    %s156 = sphi 0, %s154
    %s157 = sphi 0, %s156
    %s171 = sphi 0, %s157
    %s175 = sphi 0, %s175
    %s177 = sphi 0, %s175
    %s178 = sphi 0, %s177
    %s192 = sphi 0, %s178
    %s196 = sphi 0, %s196
    %s198 = sphi 0, %s196
    %s199 = sphi 0, %s198
    %s213 = sphi 0, %s199
    %s221 = sphi 0, %s223
    %s224 = sphi 0, %s221
    %s225 = sphi 0, %s224
    %s241 = sphi 0, %s225
  $region4: #{tpu_custom_call.1} parent=0 // loop_header_branch
    %16 = sbr.rel (%p14) target = $region8
  $region5: #{tpu_custom_call.1} parent=0 // loop_body
    %s18 = ssub.s32 %s13, 1
    %s19 = ssub.s32 %s13, 2
    %s26 = sadd.s32 1, %s21
    %p27 = scmp.ge.s32.totalorder %s26, 2
    %s28 = scalar_select %p27, 0, %s26
    %s29 = sadd.s32 1, %s20
    %s30 = scalar_select %p27, %s29, %s20
    %p31 = scmp.ge.s32.totalorder %s30, 2
    %s32 = scalar_select %p31, 0, %s30
    %s33 = smul.u32 %s21, 8
    %s34 = ssub.s32 %s33, 1
    %p35 = scmp.gt.s32.totalorder %s34, 0
    %s36 = scalar_select %p35, %s34, 0
    %s37 = smul.u32 %s28, 8
    %s38 = ssub.s32 %s37, 1
    %p39 = scmp.gt.s32.totalorder %s38, 0
    %s40 = scalar_select %p39, %s38, 0
    %s41 = ssub.s32 %s20, %s32
    %s42 = ssub.s32 %s36, %s40
    %s43 = sor.u32 %s41, %s42
    %p44 = scmp.eq.s32.totalorder %s43, 0
    %s46 = sadd.s32 %s45, 1
    %s47 = scalar_select %p44, %s45, %s46
    %p50 = pneg %p44
    %p51 = scmp.eq.s32.totalorder %s13, 3
    %p52 = por %p50, %p51
    %p53 = scmp.ne.s32.totalorder %s45, %s48
    %p54 = scmp.eq.s32.totalorder %s13, 0
    %p55 = por %p53, %p54
    %p56 = scmp.ne.s32.totalorder %s45, %s48
    %p57 = scmp.eq.s32.totalorder %s18, 3
    %p58 = por %p56, %p57
    %p59 = scmp.ne.s32.totalorder %s48, %s49
    %p60 = scmp.eq.s32.totalorder %s18, 0
    %p61 = por %p59, %p60
    %p62 = scmp.ne.s32.totalorder %s48, %s49
    %p63 = scmp.eq.s32.totalorder %s19, 3
    %p64 = por %p62, %p63
    %p66 = scmp.ne.s32.totalorder %s49, %s65
    %p67 = scmp.eq.s32.totalorder %s19, 0
    %p68 = por %p66, %p67
    %s69 = ssub.s32 %s20, %s32
    %s70 = ssub.s32 %s21, %s28
    %s71 = sor.u32 %s69, %s70
    %p72 = scmp.eq.s32.totalorder %s71, 0
    %s74 = sadd.s32 %s73, 1
    %s75 = scalar_select %p72, %s73, %s74
    %p78 = pneg %p72
    %p79 = scmp.eq.s32.totalorder %s13, 3
    %p80 = por %p78, %p79
    %p81 = scmp.ne.s32.totalorder %s73, %s76
    %p82 = scmp.eq.s32.totalorder %s13, 0
    %p83 = por %p81, %p82
    %p84 = scmp.ne.s32.totalorder %s73, %s76
    %p85 = scmp.eq.s32.totalorder %s18, 3
    %p86 = por %p84, %p85
    %p87 = scmp.ne.s32.totalorder %s76, %s77
    %p88 = scmp.eq.s32.totalorder %s18, 0
    %p89 = por %p87, %p88
    %p90 = scmp.ne.s32.totalorder %s76, %s77
    %p91 = scmp.eq.s32.totalorder %s19, 3
    %p92 = por %p90, %p91
    %p94 = scmp.ne.s32.totalorder %s77, %s93
    %p95 = scmp.eq.s32.totalorder %s19, 0
    %p96 = por %p94, %p95
    %s97 = sadd.s32 %s21, 1
    %s98 = smul.u32 %s97, 8
    %p99 = scmp.lt.s32.totalorder %s98, 15
    %s100 = scalar_select %p99, %s98, 15
    %s101 = sadd.s32 %s28, 1
    %s102 = smul.u32 %s101, 8
    %p103 = scmp.lt.s32.totalorder %s102, 15
    %s104 = scalar_select %p103, %s102, 15
    %s105 = ssub.s32 %s20, %s32
    %s106 = ssub.s32 %s100, %s104
    %s107 = sor.u32 %s105, %s106
    %p108 = scmp.eq.s32.totalorder %s107, 0
    %s110 = sadd.s32 %s109, 1
    %s111 = scalar_select %p108, %s109, %s110
    %p114 = pneg %p108
    %p115 = scmp.eq.s32.totalorder %s13, 3
    %p116 = por %p114, %p115
    %p117 = scmp.ne.s32.totalorder %s109, %s112
    %p118 = scmp.eq.s32.totalorder %s13, 0
    %p119 = por %p117, %p118
    %p120 = scmp.ne.s32.totalorder %s109, %s112
    %p121 = scmp.eq.s32.totalorder %s18, 3
    %p122 = por %p120, %p121
    %p123 = scmp.ne.s32.totalorder %s112, %s113
    %p124 = scmp.eq.s32.totalorder %s18, 0
    %p125 = por %p123, %p124
    %p126 = scmp.ne.s32.totalorder %s112, %s113
    %p127 = scmp.eq.s32.totalorder %s19, 3
    %p128 = por %p126, %p127
    %p130 = scmp.ne.s32.totalorder %s113, %s129
    %p131 = scmp.eq.s32.totalorder %s19, 0
    %p132 = por %p130, %p131
    %s134 = sadd.s32 %s133, 1
    %p137 = scmp.eq.s32.totalorder %s13, 3
    %p138 = scmp.ne.s32.totalorder %s133, %s135
    %p139 = scmp.eq.s32.totalorder %s13, 0
    %p140 = por %p138, %p139
    %p141 = scmp.ne.s32.totalorder %s133, %s135
    %p142 = scmp.eq.s32.totalorder %s18, 3
    %p143 = por %p141, %p142
    %p144 = scmp.ne.s32.totalorder %s135, %s136
    %p145 = scmp.eq.s32.totalorder %s18, 0
    %p146 = por %p144, %p145
    %p147 = scmp.ne.s32.totalorder %s135, %s136
    %p148 = scmp.eq.s32.totalorder %s19, 3
    %p149 = por %p147, %p148
    %p151 = scmp.ne.s32.totalorder %s136, %s150
    %p152 = scmp.eq.s32.totalorder %s19, 0
    %p153 = por %p151, %p152
    %s155 = sadd.s32 %s154, 1
    %p158 = scmp.eq.s32.totalorder %s13, 3
    %p159 = scmp.ne.s32.totalorder %s154, %s156
    %p160 = scmp.eq.s32.totalorder %s13, 0
    %p161 = por %p159, %p160
    %p162 = scmp.ne.s32.totalorder %s154, %s156
    %p163 = scmp.eq.s32.totalorder %s18, 3
    %p164 = por %p162, %p163
    %p165 = scmp.ne.s32.totalorder %s156, %s157
    %p166 = scmp.eq.s32.totalorder %s18, 0
    %p167 = por %p165, %p166
    %p168 = scmp.ne.s32.totalorder %s156, %s157
    %p169 = scmp.eq.s32.totalorder %s19, 3
    %p170 = por %p168, %p169
    %p172 = scmp.ne.s32.totalorder %s157, %s171
    %p173 = scmp.eq.s32.totalorder %s19, 0
    %p174 = por %p172, %p173
    %s176 = sadd.s32 %s175, 1
    %p179 = scmp.eq.s32.totalorder %s13, 3
    %p180 = scmp.ne.s32.totalorder %s175, %s177
    %p181 = scmp.eq.s32.totalorder %s13, 0
    %p182 = por %p180, %p181
    %p183 = scmp.ne.s32.totalorder %s175, %s177
    %p184 = scmp.eq.s32.totalorder %s18, 3
    %p185 = por %p183, %p184
    %p186 = scmp.ne.s32.totalorder %s177, %s178
    %p187 = scmp.eq.s32.totalorder %s18, 0
    %p188 = por %p186, %p187
    %p189 = scmp.ne.s32.totalorder %s177, %s178
    %p190 = scmp.eq.s32.totalorder %s19, 3
    %p191 = por %p189, %p190
    %p193 = scmp.ne.s32.totalorder %s178, %s192
    %p194 = scmp.eq.s32.totalorder %s19, 0
    %p195 = por %p193, %p194
    %s197 = sadd.s32 %s196, 1
    %p200 = scmp.eq.s32.totalorder %s13, 3
    %p201 = scmp.ne.s32.totalorder %s196, %s198
    %p202 = scmp.eq.s32.totalorder %s13, 0
    %p203 = por %p201, %p202
    %p204 = scmp.ne.s32.totalorder %s196, %s198
    %p205 = scmp.eq.s32.totalorder %s18, 3
    %p206 = por %p204, %p205
    %p207 = scmp.ne.s32.totalorder %s198, %s199
    %p208 = scmp.eq.s32.totalorder %s18, 0
    %p209 = por %p207, %p208
    %p210 = scmp.ne.s32.totalorder %s198, %s199
    %p211 = scmp.eq.s32.totalorder %s19, 3
    %p212 = por %p210, %p211
    %p214 = scmp.ne.s32.totalorder %s199, %s213
    %p215 = scmp.eq.s32.totalorder %s19, 0
    %p216 = por %p214, %p215
    %s217 = ssub.s32 %s20, %s32
    %s218 = ssub.s32 %s21, %s28
    %s219 = sor.u32 %s217, %s218
    %p220 = scmp.eq.s32.totalorder %s219, 0
    %s222 = sadd.s32 %s221, 1
    %s223 = scalar_select %p220, %s221, %s222
    %p226 = pneg %p220
    %p227 = scmp.eq.s32.totalorder %s13, 3
    %p228 = por %p226, %p227
    %p229 = scmp.ne.s32.totalorder %s221, %s224
    %p230 = scmp.eq.s32.totalorder %s13, 0
    %p231 = por %p229, %p230
    %p232 = scmp.ne.s32.totalorder %s221, %s224
    %p233 = scmp.eq.s32.totalorder %s18, 3
    %p234 = por %p232, %p233
    %p235 = scmp.ne.s32.totalorder %s224, %s225
    %p236 = scmp.eq.s32.totalorder %s18, 0
    %p237 = por %p235, %p236
    %p238 = scmp.ne.s32.totalorder %s224, %s225
    %p239 = scmp.eq.s32.totalorder %s19, 3
    %p240 = por %p238, %p239
    %p242 = scmp.ne.s32.totalorder %s225, %s241
    %p243 = scmp.eq.s32.totalorder %s19, 0
    %p244 = por %p242, %p243
    %p245 = scmp.le.s32.totalorder 1, %s13
    %p246 = scmp.lt.s32.totalorder %s13, 5
    %p247 = pnand %p245, %p246
    %p248 = pneg %p247
    // Predicated region
    $region9: #{tpu_custom_call.1} parent=5 // pred_check
      _
    $region10: #{tpu_custom_call.1} parent=5 // pred_check_branch
      %250 = sbr.rel (%p247) target = $region12
    $region11: #{tpu_custom_call.1} parent=5 // pred_region
      %s251 = ssub.s32 %s13, 1
      // Predicated region
      $region13: #{tpu_custom_call.1} parent=11 // pred_check
        %p252 = pneg %p146
      $region14: #{tpu_custom_call.1} parent=11 // pred_check_branch
        %254 = sbr.rel (%p252) target = $region16
      $region15: #{tpu_custom_call.1} parent=11 // pred_region
        _
      $region16: #{tpu_custom_call.1} parent=11 // pred_fallthru
        _
      // Predicated region
      $region17: #{tpu_custom_call.1} parent=11 // pred_check
        %p255 = pneg %p167
      $region18: #{tpu_custom_call.1} parent=11 // pred_check_branch
        %257 = sbr.rel (%p255) target = $region20
      $region19: #{tpu_custom_call.1} parent=11 // pred_region
        _
      $region20: #{tpu_custom_call.1} parent=11 // pred_fallthru
        _
      // Predicated region
      $region21: #{tpu_custom_call.1} parent=11 // pred_check
        %p258 = pneg %p188
      $region22: #{tpu_custom_call.1} parent=11 // pred_check_branch
        %260 = sbr.rel (%p258) target = $region24
      $region23: #{tpu_custom_call.1} parent=11 // pred_region
        _
      $region24: #{tpu_custom_call.1} parent=11 // pred_fallthru
        _
      // Predicated region
      $region25: #{tpu_custom_call.1} parent=11 // pred_check
        %p261 = pneg %p209
      $region26: #{tpu_custom_call.1} parent=11 // pred_check_branch
        %263 = sbr.rel (%p261) target = $region28
      $region27: #{tpu_custom_call.1} parent=11 // pred_region
        _
      $region28: #{tpu_custom_call.1} parent=11 // pred_fallthru
        _
    $region12: #{tpu_custom_call.1} parent=5 // pred_fallthru
      _
    %p264 = scmp.lt.s32.totalorder %s13, 4
    // Predicated region
    $region29: #{tpu_custom_call.1} parent=5 // pred_check
      %p265 = pneg %p264
    $region30: #{tpu_custom_call.1} parent=5 // pred_check_branch
      %267 = sbr.rel (%p265) target = $region32
    $region31: #{tpu_custom_call.1} parent=5 // pred_region
      // Predicated region
      $region33: #{tpu_custom_call.1} parent=31 // pred_check
        %p268 = pneg %p55
      $region34: #{tpu_custom_call.1} parent=31 // pred_check_branch
        %270 = sbr.rel (%p268) target = $region36
      $region35: #{tpu_custom_call.1} parent=31 // pred_region
        %s271 = smul.u32 %s21, 8
        %s272 = ssub.s32 %s271, 1
        %p273 = scmp.gt.s32.totalorder %s272, 0
        %s274 = scalar_select %p273, %s272, 0
        %p275 = scmp.lt.s32.totalorder %s20, 1
        %s276 = scalar_select %p275, %s20, 1
        %p277 = scmp.lt.s32.totalorder %s274, 15
        %s278 = scalar_select %p277, %s274, 15
        %s279 = smul.addr %s278, 2
        %s280 = smul.addr %s276, 32
        %s281 = sadd.s32 %s279, %s280
        %s282 = smul.addr %s281, 8
        %s283 = scalar_lea.vmem %s0, %s282
        %s284 = smul.u32 %s21, 8
        %s285 = ssub.s32 %s284, 1
        %p286 = scmp.gt.s32.totalorder %s285, 0
        %s287 = scalar_select %p286, %s285, 0
      $region36: #{tpu_custom_call.1} parent=31 // pred_fallthru
        _
      // Predicated region
      $region37: #{tpu_custom_call.1} parent=31 // pred_check
        %p288 = pneg %p83
      $region38: #{tpu_custom_call.1} parent=31 // pred_check_branch
        %290 = sbr.rel (%p288) target = $region40
      $region39: #{tpu_custom_call.1} parent=31 // pred_region
        %s291 = smul.u32 8, %s21
        %p292 = scmp.lt.s32.totalorder %s20, 1
        %s293 = scalar_select %p292, %s20, 1
        %p294 = scmp.lt.s32.totalorder %s291, 15
        %s295 = scalar_select %p294, %s291, 15
        %s296 = smul.addr %s295, 2
        %s297 = smul.addr %s293, 32
        %s298 = sadd.s32 %s296, %s297
        %s299 = smul.addr %s298, 8
        %s300 = scalar_lea.vmem %s1, %s299
        %s301 = smul.u32 8, %s21
      $region40: #{tpu_custom_call.1} parent=31 // pred_fallthru
        _
      // Predicated region
      $region41: #{tpu_custom_call.1} parent=31 // pred_check
        %p302 = pneg %p119
      $region42: #{tpu_custom_call.1} parent=31 // pred_check_branch
        %304 = sbr.rel (%p302) target = $region44
      $region43: #{tpu_custom_call.1} parent=31 // pred_region
        %s305 = sadd.s32 %s21, 1
        %s306 = smul.u32 %s305, 8
        %p307 = scmp.lt.s32.totalorder %s306, 15
        %s308 = scalar_select %p307, %s306, 15
        %p309 = scmp.lt.s32.totalorder %s20, 1
        %s310 = scalar_select %p309, %s20, 1
        %p311 = scmp.lt.s32.totalorder %s308, 15
        %s312 = scalar_select %p311, %s308, 15
        %s313 = smul.addr %s312, 2
        %s314 = smul.addr %s310, 32
        %s315 = sadd.s32 %s313, %s314
        %s316 = smul.addr %s315, 8
        %s317 = scalar_lea.vmem %s2, %s316
        %s318 = sadd.s32 %s21, 1
        %s319 = smul.u32 %s318, 8
        %p320 = scmp.lt.s32.totalorder %s319, 15
        %s321 = scalar_select %p320, %s319, 15
      $region44: #{tpu_custom_call.1} parent=31 // pred_fallthru
        _
    $region32: #{tpu_custom_call.1} parent=5 // pred_fallthru
      _
    %p322 = scmp.le.s32.totalorder 1, %s13
    %p323 = scmp.lt.s32.totalorder %s13, 5
    %p324 = pnand %p322, %p323
    %p325 = pneg %p324
    // Predicated region
    $region45: #{tpu_custom_call.1} parent=5 // pred_check
      _
    $region46: #{tpu_custom_call.1} parent=5 // pred_check_branch
      %327 = sbr.rel (%p324) target = $region48
    $region47: #{tpu_custom_call.1} parent=5 // pred_region
      %s328 = ssub.s32 %s13, 1
      %s329 = smul.u32 %s23, 8
      %s330 = ssub.s32 %s329, 1
      %p331 = scmp.gt.s32.totalorder %s330, 0
      %s332 = scalar_select %p331, %s330, 0
      %p333 = scmp.lt.s32.totalorder %s22, 1
      %s334 = scalar_select %p333, %s22, 1
      %p335 = scmp.lt.s32.totalorder %s332, 15
      %s336 = scalar_select %p335, %s332, 15
      %s337 = smul.addr %s336, 2
      %s338 = smul.addr %s334, 32
      %s339 = sadd.s32 %s337, %s338
      %s340 = smul.addr %s339, 8
      %s341 = scalar_lea.vmem %s0, %s340
      %p342 = pneg %p61
      %p343 = pneg %p58
      %s344 = smul.u32 8, %s23
      %p345 = scmp.lt.s32.totalorder %s22, 1
      %s346 = scalar_select %p345, %s22, 1
      %p347 = scmp.lt.s32.totalorder %s344, 15
      %s348 = scalar_select %p347, %s344, 15
      %s349 = smul.addr %s348, 2
      %s350 = smul.addr %s346, 32
      %s351 = sadd.s32 %s349, %s350
      %s352 = smul.addr %s351, 8
      %s353 = scalar_lea.vmem %s1, %s352
      %p354 = pneg %p89
      %p355 = pneg %p86
      %s356 = sadd.s32 %s23, 1
      %s357 = smul.u32 %s356, 8
      %p358 = scmp.lt.s32.totalorder %s357, 15
      %s359 = scalar_select %p358, %s357, 15
      %p360 = scmp.lt.s32.totalorder %s22, 1
      %s361 = scalar_select %p360, %s22, 1
      %p362 = scmp.lt.s32.totalorder %s359, 15
      %s363 = scalar_select %p362, %s359, 15
      %s364 = smul.addr %s363, 2
      %s365 = smul.addr %s361, 32
      %s366 = sadd.s32 %s364, %s365
      %s367 = smul.addr %s366, 8
      %s368 = scalar_lea.vmem %s2, %s367
      %p369 = pneg %p125
      %p370 = pneg %p122
      %p371 = pneg %p146
      %p372 = pneg %p143
      %p373 = pneg %p167
      %p374 = pneg %p164
      %p375 = pneg %p188
      %p376 = pneg %p185
      %p377 = pneg %p209
      %p378 = pneg %p206
      %p379 = pneg %p237
      %p380 = pneg %p234
      %s381 = smul.u32 8, %s23
      %p382 = scmp.lt.s32.totalorder %s22, 1
      %s383 = scalar_select %p382, %s22, 1
      %p384 = scmp.lt.s32.totalorder %s381, 15
      %s385 = scalar_select %p384, %s381, 15
      %s386 = smul.addr %s385, 2
      %s387 = smul.addr %s383, 32
      %s388 = sadd.s32 %s386, %s387
      %s389 = smul.addr %s388, 8
      %s390 = scalar_lea.vmem %s7, %s389
      %s391 = smul.u32 %s23, 8
      %s392 = ssub.s32 %s391, 1
      %p393 = scmp.gt.s32.totalorder %s392, 0
      %s394 = scalar_select %p393, %s392, 0
      %p395 = scmp.lt.s32.totalorder %s22, 1
      %s396 = scalar_select %p395, %s22, 1
      %p397 = scmp.lt.s32.totalorder %s394, 15
      %s398 = scalar_select %p397, %s394, 15
      %s399 = smul.addr %s398, 2
      %s400 = smul.addr %s396, 32
      %s401 = sadd.s32 %s399, %s400
      %s402 = smul.addr %s401, 8
      %s403 = scalar_lea.vmem %s0, %s402
      %s404 = smul.u32 %s23, 8
      %s405 = ssub.s32 %s404, 1
      %p406 = scmp.gt.s32.totalorder %s405, 0
      %s407 = scalar_select %p406, %s405, 0
      %s408 = smul.u32 8, %s23
      %p409 = scmp.lt.s32.totalorder %s22, 1
      %s410 = scalar_select %p409, %s22, 1
      %p411 = scmp.lt.s32.totalorder %s408, 15
      %s412 = scalar_select %p411, %s408, 15
      %s413 = smul.addr %s412, 2
      %s414 = smul.addr %s410, 32
      %s415 = sadd.s32 %s413, %s414
      %s416 = smul.addr %s415, 8
      %s417 = scalar_lea.vmem %s1, %s416
      %s418 = smul.u32 8, %s23
      %s419 = sadd.s32 %s23, 1
      %s420 = smul.u32 %s419, 8
      %p421 = scmp.lt.s32.totalorder %s420, 15
      %s422 = scalar_select %p421, %s420, 15
      %p423 = scmp.lt.s32.totalorder %s22, 1
      %s424 = scalar_select %p423, %s22, 1
      %p425 = scmp.lt.s32.totalorder %s422, 15
      %s426 = scalar_select %p425, %s422, 15
      %s427 = smul.addr %s426, 2
      %s428 = smul.addr %s424, 32
      %s429 = sadd.s32 %s427, %s428
      %s430 = smul.addr %s429, 8
      %s431 = scalar_lea.vmem %s2, %s430
      %s432 = sadd.s32 %s23, 1
      %s433 = smul.u32 %s432, 8
      %p434 = scmp.lt.s32.totalorder %s433, 15
      %s435 = scalar_select %p434, %s433, 15
      %s436 = smul.u32 8, %s23
      %p437 = scmp.lt.s32.totalorder %s22, 1
      %s438 = scalar_select %p437, %s22, 1
      %p439 = scmp.lt.s32.totalorder %s436, 15
      %s440 = scalar_select %p439, %s436, 15
      %s441 = smul.addr %s440, 2
      %s442 = smul.addr %s438, 32
      %s443 = sadd.s32 %s441, %s442
      %s444 = smul.addr %s443, 8
      %s445 = scalar_lea.vmem %s7, %s444
      %s446 = smul.u32 8, %s23
      %v448 = vld [vmem:[%s403] sm:$0xff]
      %v449 = vld [vmem:[%s403 + $0x8] sm:$0xff]
      %v450 = vld [vmem:[%s417] sm:$0xff]
      %v451 = vld [vmem:[%s417 + $0x8] sm:$0xff]
      %v452 = vld [vmem:[%s417 + $0x10] sm:$0xff]
      %v453 = vld [vmem:[%s417 + $0x18] sm:$0xff]
      %v454 = vld [vmem:[%s417 + $0x20] sm:$0xff]
      %v455 = vld [vmem:[%s417 + $0x28] sm:$0xff]
      %v456 = vld [vmem:[%s417 + $0x30] sm:$0xff]
      %v457 = vld [vmem:[%s417 + $0x38] sm:$0xff]
      %v458 = vld [vmem:[%s417 + $0x40] sm:$0xff]
      %v459 = vld [vmem:[%s417 + $0x48] sm:$0xff]
      %v460 = vld [vmem:[%s417 + $0x50] sm:$0xff]
      %v461 = vld [vmem:[%s417 + $0x58] sm:$0xff]
      %v462 = vld [vmem:[%s417 + $0x60] sm:$0xff]
      %v463 = vld [vmem:[%s417 + $0x68] sm:$0xff]
      %v464 = vld [vmem:[%s417 + $0x70] sm:$0xff]
      %v465 = vld [vmem:[%s417 + $0x78] sm:$0xff]
      %v466 = vld [vmem:[%s431] sm:$0xff]
      %v467 = vld [vmem:[%s431 + $0x8] sm:$0xff]
      %v468 = vld [vmem:[%s4] sm:$0x3]
      %v469 = vld [vmem:[%s3] ss:$4 sm:$0x3]
      %471 = vset.pattern.permute.xlu0 0
      %472 = vperm.xlu0 %471, %v448
      %v473 = vpop.permute.xlu0 %472
      %476 = vset.pattern.permute.xlu0 0
      %477 = vperm.xlu0 %476, %v449
      %v478 = vpop.permute.xlu0 %477
      %481 = vset.pattern.permute.xlu0 0
      %482 = vperm.xlu0 %481, %v450
      %v483 = vpop.permute.xlu0 %482
      %486 = vset.pattern.permute.xlu0 0
      %487 = vperm.xlu0 %486, %v451
      %v488 = vpop.permute.xlu0 %487
      %491 = vset.pattern.permute.xlu0 0
      %492 = vperm.xlu0 %491, %v452
      %v493 = vpop.permute.xlu0 %492
      %496 = vset.pattern.permute.xlu0 0
      %497 = vperm.xlu0 %496, %v453
      %v498 = vpop.permute.xlu0 %497
      %501 = vset.pattern.permute.xlu0 0
      %502 = vperm.xlu0 %501, %v454
      %v503 = vpop.permute.xlu0 %502
      %506 = vset.pattern.permute.xlu0 0
      %507 = vperm.xlu0 %506, %v455
      %v508 = vpop.permute.xlu0 %507
      %511 = vset.pattern.permute.xlu0 0
      %512 = vperm.xlu0 %511, %v456
      %v513 = vpop.permute.xlu0 %512
      %516 = vset.pattern.permute.xlu0 0
      %517 = vperm.xlu0 %516, %v457
      %v518 = vpop.permute.xlu0 %517
      %521 = vset.pattern.permute.xlu0 0
      %522 = vperm.xlu0 %521, %v458
      %v523 = vpop.permute.xlu0 %522
      %526 = vset.pattern.permute.xlu0 0
      %527 = vperm.xlu0 %526, %v459
      %v528 = vpop.permute.xlu0 %527
      %531 = vset.pattern.permute.xlu0 0
      %532 = vperm.xlu0 %531, %v460
      %v533 = vpop.permute.xlu0 %532
      %536 = vset.pattern.permute.xlu0 0
      %537 = vperm.xlu0 %536, %v461
      %v538 = vpop.permute.xlu0 %537
      %541 = vset.pattern.permute.xlu0 0
      %542 = vperm.xlu0 %541, %v462
      %v543 = vpop.permute.xlu0 %542
      %546 = vset.pattern.permute.xlu0 0
      %547 = vperm.xlu0 %546, %v463
      %v548 = vpop.permute.xlu0 %547
      %551 = vset.pattern.permute.xlu0 0
      %552 = vperm.xlu0 %551, %v464
      %v553 = vpop.permute.xlu0 %552
      %556 = vset.pattern.permute.xlu0 0
      %557 = vperm.xlu0 %556, %v465
      %v558 = vpop.permute.xlu0 %557
      %561 = vset.pattern.permute.xlu0 0
      %562 = vperm.xlu0 %561, %v466
      %v563 = vpop.permute.xlu0 %562
      %566 = vset.pattern.permute.xlu0 0
      %567 = vperm.xlu0 %566, %v467
      %v568 = vpop.permute.xlu0 %567
      %v571 = vperm.slane %v469, 0
      %v572 = vperm.slane %v469, 1
      %v575 = vmul.f32 %v473, %v571
      %v576 = vmul.f32 %v478, %v571
      %v577 = vmul.f32 %v483, %v571
      %v578 = vmul.f32 %v483, %v572
      %v579 = vmul.f32 %v488, %v571
      %v580 = vmul.f32 %v488, %v572
      %v581 = vmul.f32 %v493, %v571
      %v582 = vmul.f32 %v493, %v572
      %v583 = vmul.f32 %v498, %v571
      %v584 = vmul.f32 %v498, %v572
      %v585 = vmul.f32 %v503, %v571
      %v586 = vmul.f32 %v503, %v572
      %v587 = vmul.f32 %v508, %v571
      %v588 = vmul.f32 %v508, %v572
      %v589 = vmul.f32 %v513, %v571
      %v590 = vmul.f32 %v513, %v572
      %v591 = vmul.f32 %v518, %v571
      %v592 = vmul.f32 %v518, %v572
      %v593 = vmul.f32 %v523, %v571
      %v594 = vmul.f32 %v523, %v572
      %v595 = vmul.f32 %v528, %v571
      %v596 = vmul.f32 %v528, %v572
      %v597 = vmul.f32 %v533, %v571
      %v598 = vmul.f32 %v533, %v572
      %v599 = vmul.f32 %v538, %v571
      %v600 = vmul.f32 %v538, %v572
      %v601 = vmul.f32 %v543, %v571
      %v602 = vmul.f32 %v543, %v572
      %v603 = vmul.f32 %v548, %v571
      %v604 = vmul.f32 %v548, %v572
      %v605 = vmul.f32 %v553, %v571
      %v606 = vmul.f32 %v553, %v572
      %v607 = vmul.f32 %v558, %v571
      %v608 = vmul.f32 %v558, %v572
      %v609 = vmul.f32 %v563, %v571
      %v610 = vmul.f32 %v568, %v571
      %v612 = vperm.slane %v468, 0
      %v613 = vperm.slane %v468, 1
      %v616 = vadd.f32 %v612, %v575
      %v617 = vadd.f32 %v612, %v576
      %v618 = vadd.f32 %v612, %v577
      %v619 = vadd.f32 %v613, %v578
      %v620 = vadd.f32 %v612, %v579
      %v621 = vadd.f32 %v613, %v580
      %v622 = vadd.f32 %v612, %v581
      %v623 = vadd.f32 %v613, %v582
      %v624 = vadd.f32 %v612, %v583
      %v625 = vadd.f32 %v613, %v584
      %v626 = vadd.f32 %v612, %v585
      %v627 = vadd.f32 %v613, %v586
      %v628 = vadd.f32 %v612, %v587
      %v629 = vadd.f32 %v613, %v588
      %v630 = vadd.f32 %v612, %v589
      %v631 = vadd.f32 %v613, %v590
      %v632 = vadd.f32 %v612, %v591
      %v633 = vadd.f32 %v613, %v592
      %v634 = vadd.f32 %v612, %v593
      %v635 = vadd.f32 %v613, %v594
      %v636 = vadd.f32 %v612, %v595
      %v637 = vadd.f32 %v613, %v596
      %v638 = vadd.f32 %v612, %v597
      %v639 = vadd.f32 %v613, %v598
      %v640 = vadd.f32 %v612, %v599
      %v641 = vadd.f32 %v613, %v600
      %v642 = vadd.f32 %v612, %v601
      %v643 = vadd.f32 %v613, %v602
      %v644 = vadd.f32 %v612, %v603
      %v645 = vadd.f32 %v613, %v604
      %v646 = vadd.f32 %v612, %v605
      %v647 = vadd.f32 %v613, %v606
      %v648 = vadd.f32 %v612, %v607
      %v649 = vadd.f32 %v613, %v608
      %v650 = vadd.f32 %v612, %v609
      %v651 = vadd.f32 %v612, %v610
      %s652 = scalar_lea.vmem %s3, 1
      %v653 = vld [vmem:[%s652] ss:$4 sm:$0x3]
      %654 = vset.pattern.permute.xlu0 1
      %655 = vperm.xlu0 %654, %v448
      %v656 = vpop.permute.xlu0 %655
      %658 = vset.pattern.permute.xlu0 1
      %659 = vperm.xlu0 %658, %v449
      %v660 = vpop.permute.xlu0 %659
      %662 = vset.pattern.permute.xlu0 1
      %663 = vperm.xlu0 %662, %v450
      %v664 = vpop.permute.xlu0 %663
      %666 = vset.pattern.permute.xlu0 1
      %667 = vperm.xlu0 %666, %v451
      %v668 = vpop.permute.xlu0 %667
      %670 = vset.pattern.permute.xlu0 1
      %671 = vperm.xlu0 %670, %v452
      %v672 = vpop.permute.xlu0 %671
      %674 = vset.pattern.permute.xlu0 1
      %675 = vperm.xlu0 %674, %v453
      %v676 = vpop.permute.xlu0 %675
      %678 = vset.pattern.permute.xlu0 1
      %679 = vperm.xlu0 %678, %v454
      %v680 = vpop.permute.xlu0 %679
      %682 = vset.pattern.permute.xlu0 1
      %683 = vperm.xlu0 %682, %v455
      %v684 = vpop.permute.xlu0 %683
      %686 = vset.pattern.permute.xlu0 1
      %687 = vperm.xlu0 %686, %v456
      %v688 = vpop.permute.xlu0 %687
      %690 = vset.pattern.permute.xlu0 1
      %691 = vperm.xlu0 %690, %v457
      %v692 = vpop.permute.xlu0 %691
      %694 = vset.pattern.permute.xlu0 1
      %695 = vperm.xlu0 %694, %v458
      %v696 = vpop.permute.xlu0 %695
      %698 = vset.pattern.permute.xlu0 1
      %699 = vperm.xlu0 %698, %v459
      %v700 = vpop.permute.xlu0 %699
      %702 = vset.pattern.permute.xlu0 1
      %703 = vperm.xlu0 %702, %v460
      %v704 = vpop.permute.xlu0 %703
      %706 = vset.pattern.permute.xlu0 1
      %707 = vperm.xlu0 %706, %v461
      %v708 = vpop.permute.xlu0 %707
      %710 = vset.pattern.permute.xlu0 1
      %711 = vperm.xlu0 %710, %v462
      %v712 = vpop.permute.xlu0 %711
      %714 = vset.pattern.permute.xlu0 1
      %715 = vperm.xlu0 %714, %v463
      %v716 = vpop.permute.xlu0 %715
      %718 = vset.pattern.permute.xlu0 1
      %719 = vperm.xlu0 %718, %v464
      %v720 = vpop.permute.xlu0 %719
      %722 = vset.pattern.permute.xlu0 1
      %723 = vperm.xlu0 %722, %v465
      %v724 = vpop.permute.xlu0 %723
      %726 = vset.pattern.permute.xlu0 1
      %727 = vperm.xlu0 %726, %v466
      %v728 = vpop.permute.xlu0 %727
      %730 = vset.pattern.permute.xlu0 1
      %731 = vperm.xlu0 %730, %v467
      %v732 = vpop.permute.xlu0 %731
      %v735 = vperm.slane %v653, 0
      %v736 = vperm.slane %v653, 1
      %v739 = vmul.f32 %v656, %v735
      %v740 = vmul.f32 %v660, %v735
      %v741 = vmul.f32 %v664, %v735
      %v742 = vmul.f32 %v664, %v736
      %v743 = vmul.f32 %v668, %v735
      %v744 = vmul.f32 %v668, %v736
      %v745 = vmul.f32 %v672, %v735
      %v746 = vmul.f32 %v672, %v736
      %v747 = vmul.f32 %v676, %v735
      %v748 = vmul.f32 %v676, %v736
      %v749 = vmul.f32 %v680, %v735
      %v750 = vmul.f32 %v680, %v736
      %v751 = vmul.f32 %v684, %v735
      %v752 = vmul.f32 %v684, %v736
      %v753 = vmul.f32 %v688, %v735
      %v754 = vmul.f32 %v688, %v736
      %v755 = vmul.f32 %v692, %v735
      %v756 = vmul.f32 %v692, %v736
      %v757 = vmul.f32 %v696, %v735
      %v758 = vmul.f32 %v696, %v736
      %v759 = vmul.f32 %v700, %v735
      %v760 = vmul.f32 %v700, %v736
      %v761 = vmul.f32 %v704, %v735
      %v762 = vmul.f32 %v704, %v736
      %v763 = vmul.f32 %v708, %v735
      %v764 = vmul.f32 %v708, %v736
      %v765 = vmul.f32 %v712, %v735
      %v766 = vmul.f32 %v712, %v736
      %v767 = vmul.f32 %v716, %v735
      %v768 = vmul.f32 %v716, %v736
      %v769 = vmul.f32 %v720, %v735
      %v770 = vmul.f32 %v720, %v736
      %v771 = vmul.f32 %v724, %v735
      %v772 = vmul.f32 %v724, %v736
      %v773 = vmul.f32 %v728, %v735
      %v774 = vmul.f32 %v732, %v735
      %v775 = vadd.f32 %v616, %v739
      %v776 = vadd.f32 %v617, %v740
      %v777 = vadd.f32 %v618, %v741
      %v778 = vadd.f32 %v619, %v742
      %v779 = vadd.f32 %v620, %v743
      %v780 = vadd.f32 %v621, %v744
      %v781 = vadd.f32 %v622, %v745
      %v782 = vadd.f32 %v623, %v746
      %v783 = vadd.f32 %v624, %v747
      %v784 = vadd.f32 %v625, %v748
      %v785 = vadd.f32 %v626, %v749
      %v786 = vadd.f32 %v627, %v750
      %v787 = vadd.f32 %v628, %v751
      %v788 = vadd.f32 %v629, %v752
      %v789 = vadd.f32 %v630, %v753
      %v790 = vadd.f32 %v631, %v754
      %v791 = vadd.f32 %v632, %v755
      %v792 = vadd.f32 %v633, %v756
      %v793 = vadd.f32 %v634, %v757
      %v794 = vadd.f32 %v635, %v758
      %v795 = vadd.f32 %v636, %v759
      %v796 = vadd.f32 %v637, %v760
      %v797 = vadd.f32 %v638, %v761
      %v798 = vadd.f32 %v639, %v762
      %v799 = vadd.f32 %v640, %v763
      %v800 = vadd.f32 %v641, %v764
      %v801 = vadd.f32 %v642, %v765
      %v802 = vadd.f32 %v643, %v766
      %v803 = vadd.f32 %v644, %v767
      %v804 = vadd.f32 %v645, %v768
      %v805 = vadd.f32 %v646, %v769
      %v806 = vadd.f32 %v647, %v770
      %v807 = vadd.f32 %v648, %v771
      %v808 = vadd.f32 %v649, %v772
      %v809 = vadd.f32 %v650, %v773
      %v810 = vadd.f32 %v651, %v774
      %s811 = scalar_lea.vmem %s3, 2
      %v812 = vld [vmem:[%s811] ss:$4 sm:$0x3]
      %813 = vset.pattern.permute.xlu0 2
      %814 = vperm.xlu0 %813, %v448
      %v815 = vpop.permute.xlu0 %814
      %817 = vset.pattern.permute.xlu0 2
      %818 = vperm.xlu0 %817, %v449
      %v819 = vpop.permute.xlu0 %818
      %821 = vset.pattern.permute.xlu0 2
      %822 = vperm.xlu0 %821, %v450
      %v823 = vpop.permute.xlu0 %822
      %825 = vset.pattern.permute.xlu0 2
      %826 = vperm.xlu0 %825, %v451
      %v827 = vpop.permute.xlu0 %826
      %829 = vset.pattern.permute.xlu0 2
      %830 = vperm.xlu0 %829, %v452
      %v831 = vpop.permute.xlu0 %830
      %833 = vset.pattern.permute.xlu0 2
      %834 = vperm.xlu0 %833, %v453
      %v835 = vpop.permute.xlu0 %834
      %837 = vset.pattern.permute.xlu0 2
      %838 = vperm.xlu0 %837, %v454
      %v839 = vpop.permute.xlu0 %838
      %841 = vset.pattern.permute.xlu0 2
      %842 = vperm.xlu0 %841, %v455
      %v843 = vpop.permute.xlu0 %842
      %845 = vset.pattern.permute.xlu0 2
      %846 = vperm.xlu0 %845, %v456
      %v847 = vpop.permute.xlu0 %846
      %849 = vset.pattern.permute.xlu0 2
      %850 = vperm.xlu0 %849, %v457
      %v851 = vpop.permute.xlu0 %850
      %853 = vset.pattern.permute.xlu0 2
      %854 = vperm.xlu0 %853, %v458
      %v855 = vpop.permute.xlu0 %854
      %857 = vset.pattern.permute.xlu0 2
      %858 = vperm.xlu0 %857, %v459
      %v859 = vpop.permute.xlu0 %858
      %861 = vset.pattern.permute.xlu0 2
      %862 = vperm.xlu0 %861, %v460
      %v863 = vpop.permute.xlu0 %862
      %865 = vset.pattern.permute.xlu0 2
      %866 = vperm.xlu0 %865, %v461
      %v867 = vpop.permute.xlu0 %866
      %869 = vset.pattern.permute.xlu0 2
      %870 = vperm.xlu0 %869, %v462
      %v871 = vpop.permute.xlu0 %870
      %873 = vset.pattern.permute.xlu0 2
      %874 = vperm.xlu0 %873, %v463
      %v875 = vpop.permute.xlu0 %874
      %877 = vset.pattern.permute.xlu0 2
      %878 = vperm.xlu0 %877, %v464
      %v879 = vpop.permute.xlu0 %878
      %881 = vset.pattern.permute.xlu0 2
      %882 = vperm.xlu0 %881, %v465
      %v883 = vpop.permute.xlu0 %882
      %885 = vset.pattern.permute.xlu0 2
      %886 = vperm.xlu0 %885, %v466
      %v887 = vpop.permute.xlu0 %886
      %889 = vset.pattern.permute.xlu0 2
      %890 = vperm.xlu0 %889, %v467
      %v891 = vpop.permute.xlu0 %890
      %v894 = vperm.slane %v812, 0
      %v895 = vperm.slane %v812, 1
      %v898 = vmul.f32 %v815, %v894
      %v899 = vmul.f32 %v819, %v894
      %v900 = vmul.f32 %v823, %v894
      %v901 = vmul.f32 %v823, %v895
      %v902 = vmul.f32 %v827, %v894
      %v903 = vmul.f32 %v827, %v895
      %v904 = vmul.f32 %v831, %v894
      %v905 = vmul.f32 %v831, %v895
      %v906 = vmul.f32 %v835, %v894
      %v907 = vmul.f32 %v835, %v895
      %v908 = vmul.f32 %v839, %v894
      %v909 = vmul.f32 %v839, %v895
      %v910 = vmul.f32 %v843, %v894
      %v911 = vmul.f32 %v843, %v895
      %v912 = vmul.f32 %v847, %v894
      %v913 = vmul.f32 %v847, %v895
      %v914 = vmul.f32 %v851, %v894
      %v915 = vmul.f32 %v851, %v895
      %v916 = vmul.f32 %v855, %v894
      %v917 = vmul.f32 %v855, %v895
      %v918 = vmul.f32 %v859, %v894
      %v919 = vmul.f32 %v859, %v895
      %v920 = vmul.f32 %v863, %v894
      %v921 = vmul.f32 %v863, %v895
      %v922 = vmul.f32 %v867, %v894
      %v923 = vmul.f32 %v867, %v895
      %v924 = vmul.f32 %v871, %v894
      %v925 = vmul.f32 %v871, %v895
      %v926 = vmul.f32 %v875, %v894
      %v927 = vmul.f32 %v875, %v895
      %v928 = vmul.f32 %v879, %v894
      %v929 = vmul.f32 %v879, %v895
      %v930 = vmul.f32 %v883, %v894
      %v931 = vmul.f32 %v883, %v895
      %v932 = vmul.f32 %v887, %v894
      %v933 = vmul.f32 %v891, %v894
      %v934 = vadd.f32 %v775, %v898
      %v935 = vadd.f32 %v776, %v899
      %v936 = vadd.f32 %v777, %v900
      %v937 = vadd.f32 %v778, %v901
      %v938 = vadd.f32 %v779, %v902
      %v939 = vadd.f32 %v780, %v903
      %v940 = vadd.f32 %v781, %v904
      %v941 = vadd.f32 %v782, %v905
      %v942 = vadd.f32 %v783, %v906
      %v943 = vadd.f32 %v784, %v907
      %v944 = vadd.f32 %v785, %v908
      %v945 = vadd.f32 %v786, %v909
      %v946 = vadd.f32 %v787, %v910
      %v947 = vadd.f32 %v788, %v911
      %v948 = vadd.f32 %v789, %v912
      %v949 = vadd.f32 %v790, %v913
      %v950 = vadd.f32 %v791, %v914
      %v951 = vadd.f32 %v792, %v915
      %v952 = vadd.f32 %v793, %v916
      %v953 = vadd.f32 %v794, %v917
      %v954 = vadd.f32 %v795, %v918
      %v955 = vadd.f32 %v796, %v919
      %v956 = vadd.f32 %v797, %v920
      %v957 = vadd.f32 %v798, %v921
      %v958 = vadd.f32 %v799, %v922
      %v959 = vadd.f32 %v800, %v923
      %v960 = vadd.f32 %v801, %v924
      %v961 = vadd.f32 %v802, %v925
      %v962 = vadd.f32 %v803, %v926
      %v963 = vadd.f32 %v804, %v927
      %v964 = vadd.f32 %v805, %v928
      %v965 = vadd.f32 %v806, %v929
      %v966 = vadd.f32 %v807, %v930
      %v967 = vadd.f32 %v808, %v931
      %v968 = vadd.f32 %v809, %v932
      %v969 = vadd.f32 %v810, %v933
      %s970 = scalar_lea.vmem %s3, 3
      %v971 = vld [vmem:[%s970] ss:$4 sm:$0x3]
      %972 = vset.pattern.permute.xlu0 3
      %973 = vperm.xlu0 %972, %v448
      %v974 = vpop.permute.xlu0 %973
      %976 = vset.pattern.permute.xlu0 3
      %977 = vperm.xlu0 %976, %v449
      %v978 = vpop.permute.xlu0 %977
      %980 = vset.pattern.permute.xlu0 3
      %981 = vperm.xlu0 %980, %v450
      %v982 = vpop.permute.xlu0 %981
      %984 = vset.pattern.permute.xlu0 3
      %985 = vperm.xlu0 %984, %v451
      %v986 = vpop.permute.xlu0 %985
      %988 = vset.pattern.permute.xlu0 3
      %989 = vperm.xlu0 %988, %v452
      %v990 = vpop.permute.xlu0 %989
      %992 = vset.pattern.permute.xlu0 3
      %993 = vperm.xlu0 %992, %v453
      %v994 = vpop.permute.xlu0 %993
      %996 = vset.pattern.permute.xlu0 3
      %997 = vperm.xlu0 %996, %v454
      %v998 = vpop.permute.xlu0 %997
      %1000 = vset.pattern.permute.xlu0 3
      %1001 = vperm.xlu0 %1000, %v455
      %v1002 = vpop.permute.xlu0 %1001
      %1004 = vset.pattern.permute.xlu0 3
      %1005 = vperm.xlu0 %1004, %v456
      %v1006 = vpop.permute.xlu0 %1005
      %1008 = vset.pattern.permute.xlu0 3
      %1009 = vperm.xlu0 %1008, %v457
      %v1010 = vpop.permute.xlu0 %1009
      %1012 = vset.pattern.permute.xlu0 3
      %1013 = vperm.xlu0 %1012, %v458
      %v1014 = vpop.permute.xlu0 %1013
      %1016 = vset.pattern.permute.xlu0 3
      %1017 = vperm.xlu0 %1016, %v459
      %v1018 = vpop.permute.xlu0 %1017
      %1020 = vset.pattern.permute.xlu0 3
      %1021 = vperm.xlu0 %1020, %v460
      %v1022 = vpop.permute.xlu0 %1021
      %1024 = vset.pattern.permute.xlu0 3
      %1025 = vperm.xlu0 %1024, %v461
      %v1026 = vpop.permute.xlu0 %1025
      %1028 = vset.pattern.permute.xlu0 3
      %1029 = vperm.xlu0 %1028, %v462
      %v1030 = vpop.permute.xlu0 %1029
      %1032 = vset.pattern.permute.xlu0 3
      %1033 = vperm.xlu0 %1032, %v463
      %v1034 = vpop.permute.xlu0 %1033
      %1036 = vset.pattern.permute.xlu0 3
      %1037 = vperm.xlu0 %1036, %v464
      %v1038 = vpop.permute.xlu0 %1037
      %1040 = vset.pattern.permute.xlu0 3
      %1041 = vperm.xlu0 %1040, %v465
      %v1042 = vpop.permute.xlu0 %1041
      %1044 = vset.pattern.permute.xlu0 3
      %1045 = vperm.xlu0 %1044, %v466
      %v1046 = vpop.permute.xlu0 %1045
      %1048 = vset.pattern.permute.xlu0 3
      %1049 = vperm.xlu0 %1048, %v467
      %v1050 = vpop.permute.xlu0 %1049
      %v1053 = vperm.slane %v971, 0
      %v1054 = vperm.slane %v971, 1
      %v1057 = vmul.f32 %v974, %v1053
      %v1058 = vmul.f32 %v978, %v1053
      %v1059 = vmul.f32 %v982, %v1053
      %v1060 = vmul.f32 %v982, %v1054
      %v1061 = vmul.f32 %v986, %v1053
      %v1062 = vmul.f32 %v986, %v1054
      %v1063 = vmul.f32 %v990, %v1053
      %v1064 = vmul.f32 %v990, %v1054
      %v1065 = vmul.f32 %v994, %v1053
      %v1066 = vmul.f32 %v994, %v1054
      %v1067 = vmul.f32 %v998, %v1053
      %v1068 = vmul.f32 %v998, %v1054
      %v1069 = vmul.f32 %v1002, %v1053
      %v1070 = vmul.f32 %v1002, %v1054
      %v1071 = vmul.f32 %v1006, %v1053
      %v1072 = vmul.f32 %v1006, %v1054
      %v1073 = vmul.f32 %v1010, %v1053
      %v1074 = vmul.f32 %v1010, %v1054
      %v1075 = vmul.f32 %v1014, %v1053
      %v1076 = vmul.f32 %v1014, %v1054
      %v1077 = vmul.f32 %v1018, %v1053
      %v1078 = vmul.f32 %v1018, %v1054
      %v1079 = vmul.f32 %v1022, %v1053
      %v1080 = vmul.f32 %v1022, %v1054
      %v1081 = vmul.f32 %v1026, %v1053
      %v1082 = vmul.f32 %v1026, %v1054
      %v1083 = vmul.f32 %v1030, %v1053
      %v1084 = vmul.f32 %v1030, %v1054
      %v1085 = vmul.f32 %v1034, %v1053
      %v1086 = vmul.f32 %v1034, %v1054
      %v1087 = vmul.f32 %v1038, %v1053
      %v1088 = vmul.f32 %v1038, %v1054
      %v1089 = vmul.f32 %v1042, %v1053
      %v1090 = vmul.f32 %v1042, %v1054
      %v1091 = vmul.f32 %v1046, %v1053
      %v1092 = vmul.f32 %v1050, %v1053
      %v1093 = vadd.f32 %v934, %v1057
      %v1094 = vadd.f32 %v935, %v1058
      %v1095 = vadd.f32 %v936, %v1059
      %v1096 = vadd.f32 %v937, %v1060
      %v1097 = vadd.f32 %v938, %v1061
      %v1098 = vadd.f32 %v939, %v1062
      %v1099 = vadd.f32 %v940, %v1063
      %v1100 = vadd.f32 %v941, %v1064
      %v1101 = vadd.f32 %v942, %v1065
      %v1102 = vadd.f32 %v943, %v1066
      %v1103 = vadd.f32 %v944, %v1067
      %v1104 = vadd.f32 %v945, %v1068
      %v1105 = vadd.f32 %v946, %v1069
      %v1106 = vadd.f32 %v947, %v1070
      %v1107 = vadd.f32 %v948, %v1071
      %v1108 = vadd.f32 %v949, %v1072
      %v1109 = vadd.f32 %v950, %v1073
      %v1110 = vadd.f32 %v951, %v1074
      %v1111 = vadd.f32 %v952, %v1075
      %v1112 = vadd.f32 %v953, %v1076
      %v1113 = vadd.f32 %v954, %v1077
      %v1114 = vadd.f32 %v955, %v1078
      %v1115 = vadd.f32 %v956, %v1079
      %v1116 = vadd.f32 %v957, %v1080
      %v1117 = vadd.f32 %v958, %v1081
      %v1118 = vadd.f32 %v959, %v1082
      %v1119 = vadd.f32 %v960, %v1083
      %v1120 = vadd.f32 %v961, %v1084
      %v1121 = vadd.f32 %v962, %v1085
      %v1122 = vadd.f32 %v963, %v1086
      %v1123 = vadd.f32 %v964, %v1087
      %v1124 = vadd.f32 %v965, %v1088
      %v1125 = vadd.f32 %v966, %v1089
      %v1126 = vadd.f32 %v967, %v1090
      %v1127 = vadd.f32 %v968, %v1091
      %v1128 = vadd.f32 %v969, %v1092
      %v1129 = vsub.f32 0.0, %v1093
      %v1130 = vsub.f32 0.0, %v1094
      %v1131 = vsub.f32 0.0, %v1095
      %v1132 = vsub.f32 0.0, %v1097
      %v1133 = vsub.f32 0.0, %v1099
      %v1134 = vsub.f32 0.0, %v1101
      %v1135 = vsub.f32 0.0, %v1103
      %v1136 = vsub.f32 0.0, %v1105
      %v1137 = vsub.f32 0.0, %v1107
      %v1138 = vsub.f32 0.0, %v1109
      %v1139 = vsub.f32 0.0, %v1111
      %v1140 = vsub.f32 0.0, %v1113
      %v1141 = vsub.f32 0.0, %v1115
      %v1142 = vsub.f32 0.0, %v1117
      %v1143 = vsub.f32 0.0, %v1119
      %v1144 = vsub.f32 0.0, %v1121
      %v1145 = vsub.f32 0.0, %v1123
      %v1146 = vsub.f32 0.0, %v1125
      %v1147 = vsub.f32 0.0, %v1127
      %v1148 = vsub.f32 0.0, %v1128
      %v1149 = vmul.f32 %v1129, 1.442695
      %v1150 = vpow.pop %v1149
      %v1151 = vmul.f32 %v1130, 1.442695
      %v1152 = vpow.pop %v1151
      %v1153 = vmul.f32 %v1131, 1.442695
      %v1154 = vpow.pop %v1153
      %v1155 = vmul.f32 %v1132, 1.442695
      %v1156 = vpow.pop %v1155
      %v1157 = vmul.f32 %v1133, 1.442695
      %v1158 = vpow.pop %v1157
      %v1159 = vmul.f32 %v1134, 1.442695
      %v1160 = vpow.pop %v1159
      %v1161 = vmul.f32 %v1135, 1.442695
      %v1162 = vpow.pop %v1161
      %v1163 = vmul.f32 %v1136, 1.442695
      %v1164 = vpow.pop %v1163
      %v1165 = vmul.f32 %v1137, 1.442695
      %v1166 = vpow.pop %v1165
      %v1167 = vmul.f32 %v1138, 1.442695
      %v1168 = vpow.pop %v1167
      %v1169 = vmul.f32 %v1139, 1.442695
      %v1170 = vpow.pop %v1169
      %v1171 = vmul.f32 %v1140, 1.442695
      %v1172 = vpow.pop %v1171
      %v1173 = vmul.f32 %v1141, 1.442695
      %v1174 = vpow.pop %v1173
      %v1175 = vmul.f32 %v1142, 1.442695
      %v1176 = vpow.pop %v1175
      %v1177 = vmul.f32 %v1143, 1.442695
      %v1178 = vpow.pop %v1177
      %v1179 = vmul.f32 %v1144, 1.442695
      %v1180 = vpow.pop %v1179
      %v1181 = vmul.f32 %v1145, 1.442695
      %v1182 = vpow.pop %v1181
      %v1183 = vmul.f32 %v1146, 1.442695
      %v1184 = vpow.pop %v1183
      %v1185 = vmul.f32 %v1147, 1.442695
      %v1186 = vpow.pop %v1185
      %v1187 = vmul.f32 %v1148, 1.442695
      %v1188 = vpow.pop %v1187
      %v1189 = vadd.f32 %v1150, 1.0
      %v1190 = vadd.f32 %v1152, 1.0
      %v1191 = vadd.f32 %v1154, 1.0
      %v1192 = vadd.f32 %v1156, 1.0
      %v1193 = vadd.f32 %v1158, 1.0
      %v1194 = vadd.f32 %v1160, 1.0
      %v1195 = vadd.f32 %v1162, 1.0
      %v1196 = vadd.f32 %v1164, 1.0
      %v1197 = vadd.f32 %v1166, 1.0
      %v1198 = vadd.f32 %v1168, 1.0
      %v1199 = vadd.f32 %v1170, 1.0
      %v1200 = vadd.f32 %v1172, 1.0
      %v1201 = vadd.f32 %v1174, 1.0
      %v1202 = vadd.f32 %v1176, 1.0
      %v1203 = vadd.f32 %v1178, 1.0
      %v1204 = vadd.f32 %v1180, 1.0
      %v1205 = vadd.f32 %v1182, 1.0
      %v1206 = vadd.f32 %v1184, 1.0
      %v1207 = vadd.f32 %v1186, 1.0
      %v1208 = vadd.f32 %v1188, 1.0
      %v1209 = vrcp.pop %v1189
      %v1210 = vrcp.pop %v1190
      %v1211 = vrcp.pop %v1191
      %v1212 = vrcp.pop %v1192
      %v1213 = vrcp.pop %v1193
      %v1214 = vrcp.pop %v1194
      %v1215 = vrcp.pop %v1195
      %v1216 = vrcp.pop %v1196
      %v1217 = vrcp.pop %v1197
      %v1218 = vrcp.pop %v1198
      %v1219 = vrcp.pop %v1199
      %v1220 = vrcp.pop %v1200
      %v1221 = vrcp.pop %v1201
      %v1222 = vrcp.pop %v1202
      %v1223 = vrcp.pop %v1203
      %v1224 = vrcp.pop %v1204
      %v1225 = vrcp.pop %v1205
      %v1226 = vrcp.pop %v1206
      %v1227 = vrcp.pop %v1207
      %v1228 = vrcp.pop %v1208
      %v1229 = vmul.f32 %v1093, %v1209
      %v1230 = vmul.f32 %v1094, %v1210
      %v1231 = vmul.f32 %v1095, %v1211
      %v1232 = vmul.f32 %v1097, %v1212
      %v1233 = vmul.f32 %v1099, %v1213
      %v1234 = vmul.f32 %v1101, %v1214
      %v1235 = vmul.f32 %v1103, %v1215
      %v1236 = vmul.f32 %v1105, %v1216
      %v1237 = vmul.f32 %v1107, %v1217
      %v1238 = vmul.f32 %v1109, %v1218
      %v1239 = vmul.f32 %v1111, %v1219
      %v1240 = vmul.f32 %v1113, %v1220
      %v1241 = vmul.f32 %v1115, %v1221
      %v1242 = vmul.f32 %v1117, %v1222
      %v1243 = vmul.f32 %v1119, %v1223
      %v1244 = vmul.f32 %v1121, %v1224
      %v1245 = vmul.f32 %v1123, %v1225
      %v1246 = vmul.f32 %v1125, %v1226
      %v1247 = vmul.f32 %v1127, %v1227
      %v1248 = vmul.f32 %v1128, %v1228
      %p1249 = scmp.eq.s32.totalorder %s23, 0
      %s1250 = scalar_select %p1249, 1, 0
      %v1251 = vstv %s1250
      %vm1252 = vcmp.eq.s32.totalorder %v1251, 1
      %p1253 = scmp.eq.s32.totalorder %s23, 1
      %s1254 = scalar_select %p1253, 1, 0
      %v1255 = vstv %s1254
      %vm1256 = vcmp.eq.s32.totalorder %v1255, 1
      %v1257 = vsel %vm1252, 1, 0
      %v1258 = vsel %vm1256, 1, 0
      %vm1259 = vcmp.eq.s32.totalorder %v1257, 1
      %vm1260 = vcmp.eq.s32.totalorder %v1258, 1
      %v1261 = vsel %vm1259, 0.0, %v1229
      %v1262 = vsel %vm1259, 0.0, %v1230
      %v1263 = vsel 0, 0.0, %v1231
      %v1264 = vsel 0, 0.0, %v1232
      %v1265 = vsel 0, 0.0, %v1233
      %v1266 = vsel 0, 0.0, %v1234
      %v1267 = vsel 0, 0.0, %v1235
      %v1268 = vsel 0, 0.0, %v1236
      %v1269 = vsel 0, 0.0, %v1237
      %v1270 = vsel 0, 0.0, %v1238
      %v1271 = vsel 0, 0.0, %v1239
      %v1272 = vsel 0, 0.0, %v1240
      %v1273 = vsel 0, 0.0, %v1241
      %v1274 = vsel 0, 0.0, %v1242
      %v1275 = vsel 0, 0.0, %v1243
      %v1276 = vsel 0, 0.0, %v1244
      %v1277 = vsel 0, 0.0, %v1245
      %v1278 = vsel 0, 0.0, %v1246
      %v1279 = vsel %vm1260, 0.0, %v1247
      %v1280 = vsel %vm1260, 0.0, %v1248
      %v1281 = vpack.c.bf16 %v1261, %v1261
      %v1282 = vpack.c.bf16 %v1262, %v1262
      %v1283 = vpack.c.bf16 %v1263, %v1263
      %v1284 = vpack.c.bf16 %v1264, %v1264
      %v1285 = vpack.c.bf16 %v1265, %v1265
      %v1286 = vpack.c.bf16 %v1266, %v1266
      %v1287 = vpack.c.bf16 %v1267, %v1267
      %v1288 = vpack.c.bf16 %v1268, %v1268
      %v1289 = vpack.c.bf16 %v1269, %v1269
      %v1290 = vpack.c.bf16 %v1270, %v1270
      %v1291 = vpack.c.bf16 %v1271, %v1271
      %v1292 = vpack.c.bf16 %v1272, %v1272
      %v1293 = vpack.c.bf16 %v1273, %v1273
      %v1294 = vpack.c.bf16 %v1274, %v1274
      %v1295 = vpack.c.bf16 %v1275, %v1275
      %v1296 = vpack.c.bf16 %v1276, %v1276
      %v1297 = vpack.c.bf16 %v1277, %v1277
      %v1298 = vpack.c.bf16 %v1278, %v1278
      %v1299 = vpack.c.bf16 %v1279, %v1279
      %v1300 = vpack.c.bf16 %v1280, %v1280
      %v1321 = vunpack.c.l.b16 %v1281
      %v1322 = vunpack.c.l.b16 %v1282
      %v1323 = vunpack.c.l.b16 %v1283
      %v1324 = vunpack.c.l.b16 %v1284
      %v1325 = vunpack.c.l.b16 %v1285
      %v1326 = vunpack.c.l.b16 %v1286
      %v1327 = vunpack.c.l.b16 %v1287
      %v1328 = vunpack.c.l.b16 %v1288
      %v1329 = vunpack.c.l.b16 %v1289
      %v1330 = vunpack.c.l.b16 %v1290
      %v1331 = vunpack.c.l.b16 %v1291
      %v1332 = vunpack.c.l.b16 %v1292
      %v1333 = vunpack.c.l.b16 %v1293
      %v1334 = vunpack.c.l.b16 %v1294
      %v1335 = vunpack.c.l.b16 %v1295
      %v1336 = vunpack.c.l.b16 %v1296
      %v1337 = vunpack.c.l.b16 %v1297
      %v1338 = vunpack.c.l.b16 %v1298
      %v1339 = vunpack.c.l.b16 %v1299
      %v1340 = vunpack.c.l.b16 %v1300
      %v1341 = vpack.c.b16 %v1322, %v1321
      %v1342 = vpack.c.b16 %v1324, %v1323
      %v1343 = vpack.c.b16 %v1326, %v1325
      %v1344 = vpack.c.b16 %v1328, %v1327
      %v1345 = vpack.c.b16 %v1330, %v1329
      %v1346 = vpack.c.b16 %v1332, %v1331
      %v1347 = vpack.c.b16 %v1334, %v1333
      %v1348 = vpack.c.b16 %v1336, %v1335
      %v1349 = vpack.c.b16 %v1338, %v1337
      %v1350 = vpack.c.b16 %v1340, %v1339
      %v1352 = vshrl.u32 %v1341, 16
      %v1354 = vrot.slane %v1352, 7
      %v1355 = vshll.u32 %v1341, 16
      %v1357 = vor.u32 %v1354, %v1355
      %v1359 = vshrl.u32 %v1342, 16
      %v1361 = vrot.slane %v1359, 7
      %v1362 = vshll.u32 %v1342, 16
      %v1364 = vor.u32 %v1361, %v1362
      %v1366 = vshrl.u32 %v1343, 16
      %v1368 = vrot.slane %v1366, 7
      %v1369 = vshll.u32 %v1343, 16
      %v1371 = vor.u32 %v1368, %v1369
      %v1373 = vshrl.u32 %v1344, 16
      %v1375 = vrot.slane %v1373, 7
      %v1376 = vshll.u32 %v1344, 16
      %v1378 = vor.u32 %v1375, %v1376
      %v1380 = vshrl.u32 %v1345, 16
      %v1382 = vrot.slane %v1380, 7
      %v1383 = vshll.u32 %v1345, 16
      %v1385 = vor.u32 %v1382, %v1383
      %v1387 = vshrl.u32 %v1346, 16
      %v1389 = vrot.slane %v1387, 7
      %v1390 = vshll.u32 %v1346, 16
      %v1392 = vor.u32 %v1389, %v1390
      %v1394 = vshrl.u32 %v1347, 16
      %v1396 = vrot.slane %v1394, 7
      %v1397 = vshll.u32 %v1347, 16
      %v1399 = vor.u32 %v1396, %v1397
      %v1401 = vshrl.u32 %v1348, 16
      %v1403 = vrot.slane %v1401, 7
      %v1404 = vshll.u32 %v1348, 16
      %v1406 = vor.u32 %v1403, %v1404
      %v1408 = vshrl.u32 %v1349, 16
      %v1410 = vrot.slane %v1408, 7
      %v1411 = vshll.u32 %v1349, 16
      %v1413 = vor.u32 %v1410, %v1411
      %v1415 = vshrl.u32 %v1350, 16
      %v1417 = vrot.slane %v1415, 7
      %v1418 = vshll.u32 %v1350, 16
      %v1420 = vor.u32 %v1417, %v1418
      %vm1441 = vcmask 1040384
      %vm1442 = vsmask.f32 256
      %vm1443 = vmand %vm1441, %vm1442
      %v1444 = vsel %vm1443, 0, %v1357
      %v1445 = vsel %vm1443, 0, %v1364
      %v1446 = vsel %vm1443, 0, %v1371
      %v1447 = vsel %vm1443, 0, %v1378
      %v1448 = vsel %vm1443, 0, %v1385
      %v1449 = vsel %vm1443, 0, %v1392
      %v1450 = vsel %vm1443, 0, %v1399
      %v1451 = vsel %vm1443, 0, %v1406
      %v1452 = vsel %vm1443, 0, %v1413
      %v1453 = vsel %vm1443, 0, %v1420
      %v1454 = vsel %vm1443, %v1354, 0
      %v1455 = vsel %vm1443, %v1361, 0
      %v1456 = vsel %vm1443, %v1368, 0
      %v1457 = vsel %vm1443, %v1375, 0
      %v1458 = vsel %vm1443, %v1382, 0
      %v1459 = vsel %vm1443, %v1389, 0
      %v1460 = vsel %vm1443, %v1396, 0
      %v1461 = vsel %vm1443, %v1403, 0
      %v1462 = vsel %vm1443, %v1410, 0
      %v1463 = vsel %vm1443, %v1417, 0
      %v1464 = vld [vmem:[%s6] sm:$0x1]
      %v1466 = vperm.slane %v1464, 0
      %v1468 = vadd.f32 %v1096, %v1466
      %v1469 = vadd.f32 %v1098, %v1466
      %v1470 = vadd.f32 %v1100, %v1466
      %v1471 = vadd.f32 %v1102, %v1466
      %v1472 = vadd.f32 %v1104, %v1466
      %v1473 = vadd.f32 %v1106, %v1466
      %v1474 = vadd.f32 %v1108, %v1466
      %v1475 = vadd.f32 %v1110, %v1466
      %v1476 = vadd.f32 %v1112, %v1466
      %v1477 = vadd.f32 %v1114, %v1466
      %v1478 = vadd.f32 %v1116, %v1466
      %v1479 = vadd.f32 %v1118, %v1466
      %v1480 = vadd.f32 %v1120, %v1466
      %v1481 = vadd.f32 %v1122, %v1466
      %v1482 = vadd.f32 %v1124, %v1466
      %v1483 = vadd.f32 %v1126, %v1466
      %v1484 = vld [vmem:[%s5] sm:$0xf]
      %v1485 = vld [vmem:[%s5 + $0x4] sm:$0xf]
      %v1486 = vld [vmem:[%s5 + $0x8] sm:$0xf]
      %v1487 = vld [vmem:[%s5 + $0xc] sm:$0xf]
      %v1488 = vld [vmem:[%s5 + $0x10] sm:$0xf]
      %v1489 = vld [vmem:[%s5 + $0x14] sm:$0xf]
      %v1490 = vld [vmem:[%s5 + $0x18] sm:$0xf]
      %v1491 = vld [vmem:[%s5 + $0x1c] sm:$0xf]
      %v1492 = vld [vmem:[%s5 + $0x20] sm:$0xf]
      %v1493 = vld [vmem:[%s5 + $0x24] sm:$0xf]
      %v1494 = vld [vmem:[%s5 + $0x28] sm:$0xf]
      %v1495 = vld [vmem:[%s5 + $0x2c] sm:$0xf]
      %v1496 = vld [vmem:[%s5 + $0x30] sm:$0xf]
      %v1497 = vld [vmem:[%s5 + $0x34] sm:$0xf]
      %v1498 = vld [vmem:[%s5 + $0x38] sm:$0xf]
      %v1499 = vld [vmem:[%s5 + $0x3c] sm:$0xf]
      %v1516 = vunpack.c.l.b16 %v1484
      %v1517 = vunpack.c.l.b16 %v1485
      %v1518 = vunpack.c.l.b16 %v1486
      %v1519 = vunpack.c.l.b16 %v1487
      %v1520 = vunpack.c.l.b16 %v1488
      %v1521 = vunpack.c.l.b16 %v1489
      %v1522 = vunpack.c.l.b16 %v1490
      %v1523 = vunpack.c.l.b16 %v1491
      %v1524 = vunpack.c.l.b16 %v1492
      %v1525 = vunpack.c.l.b16 %v1493
      %v1526 = vunpack.c.l.b16 %v1494
      %v1527 = vunpack.c.l.b16 %v1495
      %v1528 = vunpack.c.l.b16 %v1496
      %v1529 = vunpack.c.l.b16 %v1497
      %v1530 = vunpack.c.l.b16 %v1498
      %v1531 = vunpack.c.l.b16 %v1499
      %v1532 = vpack.c.b16 %v1517, %v1516
      %v1533 = vpack.c.b16 %v1519, %v1518
      %v1534 = vpack.c.b16 %v1521, %v1520
      %v1535 = vpack.c.b16 %v1523, %v1522
      %v1536 = vpack.c.b16 %v1525, %v1524
      %v1537 = vpack.c.b16 %v1527, %v1526
      %v1538 = vpack.c.b16 %v1529, %v1528
      %v1539 = vpack.c.b16 %v1531, %v1530
      %1548 = vmatpush.bf16.msra.mxu0 %v1539
      %1549 = vmatpush.bf16.msra.mxu0 %v1538
      %1550 = vmatpush.bf16.msra.mxu0 %v1537
      %1551 = vmatpush.bf16.msra.mxu0 %v1536
      %1552 = vmatpush.bf16.msra.mxu0 %v1535
      %1553 = vmatpush.bf16.msra.mxu0 %v1534
      %1554 = vmatpush.bf16.msra.mxu0 %v1533
      %1555 = vmatpush.bf16.msra.mxu0 %v1532
      %1556 = vmatmul.bf16.gmra.mxu0 %v1444
      %v1557 = vpop.f32.mrf.mxu0
      %v1558 = vadd.f32 0.0, %v1557
      %v1559 = vpop.f32.mrf.mxu0
      %v1560 = vadd.f32 0.0, %v1559
      %1561 = vmatmul.bf16.gmra.mxu0 %v1445
      %v1562 = vpop.f32.mrf.mxu0
      %v1563 = vadd.f32 0.0, %v1562
      %v1564 = vpop.f32.mrf.mxu0
      %v1565 = vadd.f32 0.0, %v1564
      %1566 = vmatmul.bf16.gmra.mxu0 %v1446
      %v1567 = vpop.f32.mrf.mxu0
      %v1568 = vadd.f32 0.0, %v1567
      %v1569 = vpop.f32.mrf.mxu0
      %v1570 = vadd.f32 0.0, %v1569
      %1571 = vmatmul.bf16.gmra.mxu0 %v1447
      %v1572 = vpop.f32.mrf.mxu0
      %v1573 = vadd.f32 0.0, %v1572
      %v1574 = vpop.f32.mrf.mxu0
      %v1575 = vadd.f32 0.0, %v1574
      %1576 = vmatmul.bf16.gmra.mxu0 %v1448
      %v1577 = vpop.f32.mrf.mxu0
      %v1578 = vadd.f32 0.0, %v1577
      %v1579 = vpop.f32.mrf.mxu0
      %v1580 = vadd.f32 0.0, %v1579
      %1581 = vmatmul.bf16.gmra.mxu0 %v1449
      %v1582 = vpop.f32.mrf.mxu0
      %v1583 = vadd.f32 0.0, %v1582
      %v1584 = vpop.f32.mrf.mxu0
      %v1585 = vadd.f32 0.0, %v1584
      %1586 = vmatmul.bf16.gmra.mxu0 %v1450
      %v1587 = vpop.f32.mrf.mxu0
      %v1588 = vadd.f32 0.0, %v1587
      %v1589 = vpop.f32.mrf.mxu0
      %v1590 = vadd.f32 0.0, %v1589
      %1591 = vmatmul.bf16.gmra.mxu0 %v1451
      %v1592 = vpop.f32.mrf.mxu0
      %v1593 = vadd.f32 0.0, %v1592
      %v1594 = vpop.f32.mrf.mxu0
      %v1595 = vadd.f32 0.0, %v1594
      %1596 = vdwg.mxu0
      %v1597 = vadd.f32 %v1468, %v1558
      %v1598 = vadd.f32 %v1469, %v1560
      %v1599 = vadd.f32 %v1470, %v1563
      %v1600 = vadd.f32 %v1471, %v1565
      %v1601 = vadd.f32 %v1472, %v1568
      %v1602 = vadd.f32 %v1473, %v1570
      %v1603 = vadd.f32 %v1474, %v1573
      %v1604 = vadd.f32 %v1475, %v1575
      %v1605 = vadd.f32 %v1476, %v1578
      %v1606 = vadd.f32 %v1477, %v1580
      %v1607 = vadd.f32 %v1478, %v1583
      %v1608 = vadd.f32 %v1479, %v1585
      %v1609 = vadd.f32 %v1480, %v1588
      %v1610 = vadd.f32 %v1481, %v1590
      %v1611 = vadd.f32 %v1482, %v1593
      %v1612 = vadd.f32 %v1483, %v1595
      %vm1613 = vsmask.f32 7424
      %v1615 = vshrl.u32 %v1444, 16
      %v1617 = vshll.u32 %v1444, 16
      %v1619 = vrot.slane %v1617, 1
      %v1620 = vor.u32 %v1615, %v1619
      %v1622 = vshll.u32 %v1454, 16
      %v1624 = vrot.slane %v1622, 1
      %v1625 = vsel %vm1613, %v1620, %v1624
      %v1627 = vshrl.u32 %v1445, 16
      %v1629 = vshll.u32 %v1445, 16
      %v1631 = vrot.slane %v1629, 1
      %v1632 = vor.u32 %v1627, %v1631
      %v1634 = vshll.u32 %v1455, 16
      %v1636 = vrot.slane %v1634, 1
      %v1637 = vsel %vm1613, %v1632, %v1636
      %v1639 = vshrl.u32 %v1446, 16
      %v1641 = vshll.u32 %v1446, 16
      %v1643 = vrot.slane %v1641, 1
      %v1644 = vor.u32 %v1639, %v1643
      %v1646 = vshll.u32 %v1456, 16
      %v1648 = vrot.slane %v1646, 1
      %v1649 = vsel %vm1613, %v1644, %v1648
      %v1651 = vshrl.u32 %v1447, 16
      %v1653 = vshll.u32 %v1447, 16
      %v1655 = vrot.slane %v1653, 1
      %v1656 = vor.u32 %v1651, %v1655
      %v1658 = vshll.u32 %v1457, 16
      %v1660 = vrot.slane %v1658, 1
      %v1661 = vsel %vm1613, %v1656, %v1660
      %v1663 = vshrl.u32 %v1448, 16
      %v1665 = vshll.u32 %v1448, 16
      %v1667 = vrot.slane %v1665, 1
      %v1668 = vor.u32 %v1663, %v1667
      %v1670 = vshll.u32 %v1458, 16
      %v1672 = vrot.slane %v1670, 1
      %v1673 = vsel %vm1613, %v1668, %v1672
      %v1675 = vshrl.u32 %v1449, 16
      %v1677 = vshll.u32 %v1449, 16
      %v1679 = vrot.slane %v1677, 1
      %v1680 = vor.u32 %v1675, %v1679
      %v1682 = vshll.u32 %v1459, 16
      %v1684 = vrot.slane %v1682, 1
      %v1685 = vsel %vm1613, %v1680, %v1684
      %v1687 = vshrl.u32 %v1450, 16
      %v1689 = vshll.u32 %v1450, 16
      %v1691 = vrot.slane %v1689, 1
      %v1692 = vor.u32 %v1687, %v1691
      %v1694 = vshll.u32 %v1460, 16
      %v1696 = vrot.slane %v1694, 1
      %v1697 = vsel %vm1613, %v1692, %v1696
      %v1699 = vshrl.u32 %v1451, 16
      %v1701 = vshll.u32 %v1451, 16
      %v1703 = vrot.slane %v1701, 1
      %v1704 = vor.u32 %v1699, %v1703
      %v1706 = vshll.u32 %v1461, 16
      %v1708 = vrot.slane %v1706, 1
      %v1709 = vsel %vm1613, %v1704, %v1708
      %v1718 = vld [vmem:[%s5 + $0x40] sm:$0xf]
      %v1719 = vld [vmem:[%s5 + $0x44] sm:$0xf]
      %v1720 = vld [vmem:[%s5 + $0x48] sm:$0xf]
      %v1721 = vld [vmem:[%s5 + $0x4c] sm:$0xf]
      %v1722 = vld [vmem:[%s5 + $0x50] sm:$0xf]
      %v1723 = vld [vmem:[%s5 + $0x54] sm:$0xf]
      %v1724 = vld [vmem:[%s5 + $0x58] sm:$0xf]
      %v1725 = vld [vmem:[%s5 + $0x5c] sm:$0xf]
      %v1726 = vld [vmem:[%s5 + $0x60] sm:$0xf]
      %v1727 = vld [vmem:[%s5 + $0x64] sm:$0xf]
      %v1728 = vld [vmem:[%s5 + $0x68] sm:$0xf]
      %v1729 = vld [vmem:[%s5 + $0x6c] sm:$0xf]
      %v1730 = vld [vmem:[%s5 + $0x70] sm:$0xf]
      %v1731 = vld [vmem:[%s5 + $0x74] sm:$0xf]
      %v1732 = vld [vmem:[%s5 + $0x78] sm:$0xf]
      %v1733 = vld [vmem:[%s5 + $0x7c] sm:$0xf]
      %v1750 = vunpack.c.l.b16 %v1718
      %v1751 = vunpack.c.l.b16 %v1719
      %v1752 = vunpack.c.l.b16 %v1720
      %v1753 = vunpack.c.l.b16 %v1721
      %v1754 = vunpack.c.l.b16 %v1722
      %v1755 = vunpack.c.l.b16 %v1723
      %v1756 = vunpack.c.l.b16 %v1724
      %v1757 = vunpack.c.l.b16 %v1725
      %v1758 = vunpack.c.l.b16 %v1726
      %v1759 = vunpack.c.l.b16 %v1727
      %v1760 = vunpack.c.l.b16 %v1728
      %v1761 = vunpack.c.l.b16 %v1729
      %v1762 = vunpack.c.l.b16 %v1730
      %v1763 = vunpack.c.l.b16 %v1731
      %v1764 = vunpack.c.l.b16 %v1732
      %v1765 = vunpack.c.l.b16 %v1733
      %v1766 = vpack.c.b16 %v1751, %v1750
      %v1767 = vpack.c.b16 %v1753, %v1752
      %v1768 = vpack.c.b16 %v1755, %v1754
      %v1769 = vpack.c.b16 %v1757, %v1756
      %v1770 = vpack.c.b16 %v1759, %v1758
      %v1771 = vpack.c.b16 %v1761, %v1760
      %v1772 = vpack.c.b16 %v1763, %v1762
      %v1773 = vpack.c.b16 %v1765, %v1764
      %1782 = vmatpush.bf16.msra.mxu0 %v1773
      %1783 = vmatpush.bf16.msra.mxu0 %v1772
      %1784 = vmatpush.bf16.msra.mxu0 %v1771
      %1785 = vmatpush.bf16.msra.mxu0 %v1770
      %1786 = vmatpush.bf16.msra.mxu0 %v1769
      %1787 = vmatpush.bf16.msra.mxu0 %v1768
      %1788 = vmatpush.bf16.msra.mxu0 %v1767
      %1789 = vmatpush.bf16.msra.mxu0 %v1766
      %1790 = vmatmul.bf16.gmra.mxu0 %v1625
      %v1791 = vpop.f32.mrf.mxu0
      %v1792 = vadd.f32 0.0, %v1791
      %v1793 = vpop.f32.mrf.mxu0
      %v1794 = vadd.f32 0.0, %v1793
      %1795 = vmatmul.bf16.gmra.mxu0 %v1637
      %v1796 = vpop.f32.mrf.mxu0
      %v1797 = vadd.f32 0.0, %v1796
      %v1798 = vpop.f32.mrf.mxu0
      %v1799 = vadd.f32 0.0, %v1798
      %1800 = vmatmul.bf16.gmra.mxu0 %v1649
      %v1801 = vpop.f32.mrf.mxu0
      %v1802 = vadd.f32 0.0, %v1801
      %v1803 = vpop.f32.mrf.mxu0
      %v1804 = vadd.f32 0.0, %v1803
      %1805 = vmatmul.bf16.gmra.mxu0 %v1661
      %v1806 = vpop.f32.mrf.mxu0
      %v1807 = vadd.f32 0.0, %v1806
      %v1808 = vpop.f32.mrf.mxu0
      %v1809 = vadd.f32 0.0, %v1808
      %1810 = vmatmul.bf16.gmra.mxu0 %v1673
      %v1811 = vpop.f32.mrf.mxu0
      %v1812 = vadd.f32 0.0, %v1811
      %v1813 = vpop.f32.mrf.mxu0
      %v1814 = vadd.f32 0.0, %v1813
      %1815 = vmatmul.bf16.gmra.mxu0 %v1685
      %v1816 = vpop.f32.mrf.mxu0
      %v1817 = vadd.f32 0.0, %v1816
      %v1818 = vpop.f32.mrf.mxu0
      %v1819 = vadd.f32 0.0, %v1818
      %1820 = vmatmul.bf16.gmra.mxu0 %v1697
      %v1821 = vpop.f32.mrf.mxu0
      %v1822 = vadd.f32 0.0, %v1821
      %v1823 = vpop.f32.mrf.mxu0
      %v1824 = vadd.f32 0.0, %v1823
      %1825 = vmatmul.bf16.gmra.mxu0 %v1709
      %v1826 = vpop.f32.mrf.mxu0
      %v1827 = vadd.f32 0.0, %v1826
      %v1828 = vpop.f32.mrf.mxu0
      %v1829 = vadd.f32 0.0, %v1828
      %1830 = vdwg.mxu0
      %v1831 = vadd.f32 %v1597, %v1792
      %v1832 = vadd.f32 %v1598, %v1794
      %v1833 = vadd.f32 %v1599, %v1797
      %v1834 = vadd.f32 %v1600, %v1799
      %v1835 = vadd.f32 %v1601, %v1802
      %v1836 = vadd.f32 %v1602, %v1804
      %v1837 = vadd.f32 %v1603, %v1807
      %v1838 = vadd.f32 %v1604, %v1809
      %v1839 = vadd.f32 %v1605, %v1812
      %v1840 = vadd.f32 %v1606, %v1814
      %v1841 = vadd.f32 %v1607, %v1817
      %v1842 = vadd.f32 %v1608, %v1819
      %v1843 = vadd.f32 %v1609, %v1822
      %v1844 = vadd.f32 %v1610, %v1824
      %v1845 = vadd.f32 %v1611, %v1827
      %v1846 = vadd.f32 %v1612, %v1829
      %vm1863 = vcmask 1046528
      %v1864 = vrot.slane %v1444, 1
      %v1865 = vrot.slane %v1454, 1
      %v1866 = vsel %vm1863, %v1864, %v1865
      %v1867 = vrot.slane %v1445, 1
      %v1868 = vrot.slane %v1455, 1
      %v1869 = vsel %vm1863, %v1867, %v1868
      %v1870 = vrot.slane %v1446, 1
      %v1871 = vrot.slane %v1456, 1
      %v1872 = vsel %vm1863, %v1870, %v1871
      %v1873 = vrot.slane %v1447, 1
      %v1874 = vrot.slane %v1457, 1
      %v1875 = vsel %vm1863, %v1873, %v1874
      %v1876 = vrot.slane %v1448, 1
      %v1877 = vrot.slane %v1458, 1
      %v1878 = vsel %vm1863, %v1876, %v1877
      %v1879 = vrot.slane %v1449, 1
      %v1880 = vrot.slane %v1459, 1
      %v1881 = vsel %vm1863, %v1879, %v1880
      %v1882 = vrot.slane %v1450, 1
      %v1883 = vrot.slane %v1460, 1
      %v1884 = vsel %vm1863, %v1882, %v1883
      %v1885 = vrot.slane %v1451, 1
      %v1886 = vrot.slane %v1461, 1
      %v1887 = vsel %vm1863, %v1885, %v1886
      %v1896 = vld [vmem:[%s5 + $0x80] sm:$0xf]
      %v1897 = vld [vmem:[%s5 + $0x84] sm:$0xf]
      %v1898 = vld [vmem:[%s5 + $0x88] sm:$0xf]
      %v1899 = vld [vmem:[%s5 + $0x8c] sm:$0xf]
      %v1900 = vld [vmem:[%s5 + $0x90] sm:$0xf]
      %v1901 = vld [vmem:[%s5 + $0x94] sm:$0xf]
      %v1902 = vld [vmem:[%s5 + $0x98] sm:$0xf]
      %v1903 = vld [vmem:[%s5 + $0x9c] sm:$0xf]
      %v1904 = vld [vmem:[%s5 + $0xa0] sm:$0xf]
      %v1905 = vld [vmem:[%s5 + $0xa4] sm:$0xf]
      %v1906 = vld [vmem:[%s5 + $0xa8] sm:$0xf]
      %v1907 = vld [vmem:[%s5 + $0xac] sm:$0xf]
      %v1908 = vld [vmem:[%s5 + $0xb0] sm:$0xf]
      %v1909 = vld [vmem:[%s5 + $0xb4] sm:$0xf]
      %v1910 = vld [vmem:[%s5 + $0xb8] sm:$0xf]
      %v1911 = vld [vmem:[%s5 + $0xbc] sm:$0xf]
      %v1928 = vunpack.c.l.b16 %v1896
      %v1929 = vunpack.c.l.b16 %v1897
      %v1930 = vunpack.c.l.b16 %v1898
      %v1931 = vunpack.c.l.b16 %v1899
      %v1932 = vunpack.c.l.b16 %v1900
      %v1933 = vunpack.c.l.b16 %v1901
      %v1934 = vunpack.c.l.b16 %v1902
      %v1935 = vunpack.c.l.b16 %v1903
      %v1936 = vunpack.c.l.b16 %v1904
      %v1937 = vunpack.c.l.b16 %v1905
      %v1938 = vunpack.c.l.b16 %v1906
      %v1939 = vunpack.c.l.b16 %v1907
      %v1940 = vunpack.c.l.b16 %v1908
      %v1941 = vunpack.c.l.b16 %v1909
      %v1942 = vunpack.c.l.b16 %v1910
      %v1943 = vunpack.c.l.b16 %v1911
      %v1944 = vpack.c.b16 %v1929, %v1928
      %v1945 = vpack.c.b16 %v1931, %v1930
      %v1946 = vpack.c.b16 %v1933, %v1932
      %v1947 = vpack.c.b16 %v1935, %v1934
      %v1948 = vpack.c.b16 %v1937, %v1936
      %v1949 = vpack.c.b16 %v1939, %v1938
      %v1950 = vpack.c.b16 %v1941, %v1940
      %v1951 = vpack.c.b16 %v1943, %v1942
      %1960 = vmatpush.bf16.msra.mxu0 %v1951
      %1961 = vmatpush.bf16.msra.mxu0 %v1950
      %1962 = vmatpush.bf16.msra.mxu0 %v1949
      %1963 = vmatpush.bf16.msra.mxu0 %v1948
      %1964 = vmatpush.bf16.msra.mxu0 %v1947
      %1965 = vmatpush.bf16.msra.mxu0 %v1946
      %1966 = vmatpush.bf16.msra.mxu0 %v1945
      %1967 = vmatpush.bf16.msra.mxu0 %v1944
      %1968 = vmatmul.bf16.gmra.mxu0 %v1866
      %v1969 = vpop.f32.mrf.mxu0
      %v1970 = vadd.f32 0.0, %v1969
      %v1971 = vpop.f32.mrf.mxu0
      %v1972 = vadd.f32 0.0, %v1971
      %1973 = vmatmul.bf16.gmra.mxu0 %v1869
      %v1974 = vpop.f32.mrf.mxu0
      %v1975 = vadd.f32 0.0, %v1974
      %v1976 = vpop.f32.mrf.mxu0
      %v1977 = vadd.f32 0.0, %v1976
      %1978 = vmatmul.bf16.gmra.mxu0 %v1872
      %v1979 = vpop.f32.mrf.mxu0
      %v1980 = vadd.f32 0.0, %v1979
      %v1981 = vpop.f32.mrf.mxu0
      %v1982 = vadd.f32 0.0, %v1981
      %1983 = vmatmul.bf16.gmra.mxu0 %v1875
      %v1984 = vpop.f32.mrf.mxu0
      %v1985 = vadd.f32 0.0, %v1984
      %v1986 = vpop.f32.mrf.mxu0
      %v1987 = vadd.f32 0.0, %v1986
      %1988 = vmatmul.bf16.gmra.mxu0 %v1878
      %v1989 = vpop.f32.mrf.mxu0
      %v1990 = vadd.f32 0.0, %v1989
      %v1991 = vpop.f32.mrf.mxu0
      %v1992 = vadd.f32 0.0, %v1991
      %1993 = vmatmul.bf16.gmra.mxu0 %v1881
      %v1994 = vpop.f32.mrf.mxu0
      %v1995 = vadd.f32 0.0, %v1994
      %v1996 = vpop.f32.mrf.mxu0
      %v1997 = vadd.f32 0.0, %v1996
      %1998 = vmatmul.bf16.gmra.mxu0 %v1884
      %v1999 = vpop.f32.mrf.mxu0
      %v2000 = vadd.f32 0.0, %v1999
      %v2001 = vpop.f32.mrf.mxu0
      %v2002 = vadd.f32 0.0, %v2001
      %2003 = vmatmul.bf16.gmra.mxu0 %v1887
      %v2004 = vpop.f32.mrf.mxu0
      %v2005 = vadd.f32 0.0, %v2004
      %v2006 = vpop.f32.mrf.mxu0
      %v2007 = vadd.f32 0.0, %v2006
      %2008 = vdwg.mxu0
      %v2009 = vadd.f32 %v1831, %v1970
      %v2010 = vadd.f32 %v1832, %v1972
      %v2011 = vadd.f32 %v1833, %v1975
      %v2012 = vadd.f32 %v1834, %v1977
      %v2013 = vadd.f32 %v1835, %v1980
      %v2014 = vadd.f32 %v1836, %v1982
      %v2015 = vadd.f32 %v1837, %v1985
      %v2016 = vadd.f32 %v1838, %v1987
      %v2017 = vadd.f32 %v1839, %v1990
      %v2018 = vadd.f32 %v1840, %v1992
      %v2019 = vadd.f32 %v1841, %v1995
      %v2020 = vadd.f32 %v1842, %v1997
      %v2021 = vadd.f32 %v1843, %v2000
      %v2022 = vadd.f32 %v1844, %v2002
      %v2023 = vadd.f32 %v1845, %v2005
      %v2024 = vadd.f32 %v1846, %v2007
      %v2025 = vld [vmem:[%s5 + $0xc0] sm:$0xf]
      %v2026 = vld [vmem:[%s5 + $0xc4] sm:$0xf]
      %v2027 = vld [vmem:[%s5 + $0xc8] sm:$0xf]
      %v2028 = vld [vmem:[%s5 + $0xcc] sm:$0xf]
      %v2029 = vld [vmem:[%s5 + $0xd0] sm:$0xf]
      %v2030 = vld [vmem:[%s5 + $0xd4] sm:$0xf]
      %v2031 = vld [vmem:[%s5 + $0xd8] sm:$0xf]
      %v2032 = vld [vmem:[%s5 + $0xdc] sm:$0xf]
      %v2033 = vld [vmem:[%s5 + $0xe0] sm:$0xf]
      %v2034 = vld [vmem:[%s5 + $0xe4] sm:$0xf]
      %v2035 = vld [vmem:[%s5 + $0xe8] sm:$0xf]
      %v2036 = vld [vmem:[%s5 + $0xec] sm:$0xf]
      %v2037 = vld [vmem:[%s5 + $0xf0] sm:$0xf]
      %v2038 = vld [vmem:[%s5 + $0xf4] sm:$0xf]
      %v2039 = vld [vmem:[%s5 + $0xf8] sm:$0xf]
      %v2040 = vld [vmem:[%s5 + $0xfc] sm:$0xf]
      %v2057 = vunpack.c.l.b16 %v2025
      %v2058 = vunpack.c.l.b16 %v2026
      %v2059 = vunpack.c.l.b16 %v2027
      %v2060 = vunpack.c.l.b16 %v2028
      %v2061 = vunpack.c.l.b16 %v2029
      %v2062 = vunpack.c.l.b16 %v2030
      %v2063 = vunpack.c.l.b16 %v2031
      %v2064 = vunpack.c.l.b16 %v2032
      %v2065 = vunpack.c.l.b16 %v2033
      %v2066 = vunpack.c.l.b16 %v2034
      %v2067 = vunpack.c.l.b16 %v2035
      %v2068 = vunpack.c.l.b16 %v2036
      %v2069 = vunpack.c.l.b16 %v2037
      %v2070 = vunpack.c.l.b16 %v2038
      %v2071 = vunpack.c.l.b16 %v2039
      %v2072 = vunpack.c.l.b16 %v2040
      %v2073 = vpack.c.b16 %v2058, %v2057
      %v2074 = vpack.c.b16 %v2060, %v2059
      %v2075 = vpack.c.b16 %v2062, %v2061
      %v2076 = vpack.c.b16 %v2064, %v2063
      %v2077 = vpack.c.b16 %v2066, %v2065
      %v2078 = vpack.c.b16 %v2068, %v2067
      %v2079 = vpack.c.b16 %v2070, %v2069
      %v2080 = vpack.c.b16 %v2072, %v2071
      %2089 = vmatpush.bf16.msra.mxu0 %v2080
      %2090 = vmatpush.bf16.msra.mxu0 %v2079
      %2091 = vmatpush.bf16.msra.mxu0 %v2078
      %2092 = vmatpush.bf16.msra.mxu0 %v2077
      %2093 = vmatpush.bf16.msra.mxu0 %v2076
      %2094 = vmatpush.bf16.msra.mxu0 %v2075
      %2095 = vmatpush.bf16.msra.mxu0 %v2074
      %2096 = vmatpush.bf16.msra.mxu0 %v2073
      %2097 = vmatmul.bf16.gmra.mxu0 %v1445
      %v2098 = vpop.f32.mrf.mxu0
      %v2099 = vadd.f32 0.0, %v2098
      %v2100 = vpop.f32.mrf.mxu0
      %v2101 = vadd.f32 0.0, %v2100
      %2102 = vmatmul.bf16.gmra.mxu0 %v1446
      %v2103 = vpop.f32.mrf.mxu0
      %v2104 = vadd.f32 0.0, %v2103
      %v2105 = vpop.f32.mrf.mxu0
      %v2106 = vadd.f32 0.0, %v2105
      %2107 = vmatmul.bf16.gmra.mxu0 %v1447
      %v2108 = vpop.f32.mrf.mxu0
      %v2109 = vadd.f32 0.0, %v2108
      %v2110 = vpop.f32.mrf.mxu0
      %v2111 = vadd.f32 0.0, %v2110
      %2112 = vmatmul.bf16.gmra.mxu0 %v1448
      %v2113 = vpop.f32.mrf.mxu0
      %v2114 = vadd.f32 0.0, %v2113
      %v2115 = vpop.f32.mrf.mxu0
      %v2116 = vadd.f32 0.0, %v2115
      %2117 = vmatmul.bf16.gmra.mxu0 %v1449
      %v2118 = vpop.f32.mrf.mxu0
      %v2119 = vadd.f32 0.0, %v2118
      %v2120 = vpop.f32.mrf.mxu0
      %v2121 = vadd.f32 0.0, %v2120
      %2122 = vmatmul.bf16.gmra.mxu0 %v1450
      %v2123 = vpop.f32.mrf.mxu0
      %v2124 = vadd.f32 0.0, %v2123
      %v2125 = vpop.f32.mrf.mxu0
      %v2126 = vadd.f32 0.0, %v2125
      %2127 = vmatmul.bf16.gmra.mxu0 %v1451
      %v2128 = vpop.f32.mrf.mxu0
      %v2129 = vadd.f32 0.0, %v2128
      %v2130 = vpop.f32.mrf.mxu0
      %v2131 = vadd.f32 0.0, %v2130
      %2132 = vmatmul.bf16.gmra.mxu0 %v1452
      %v2133 = vpop.f32.mrf.mxu0
      %v2134 = vadd.f32 0.0, %v2133
      %v2135 = vpop.f32.mrf.mxu0
      %v2136 = vadd.f32 0.0, %v2135
      %2137 = vdwg.mxu0
      %v2138 = vadd.f32 %v2009, %v2099
      %v2139 = vadd.f32 %v2010, %v2101
      %v2140 = vadd.f32 %v2011, %v2104
      %v2141 = vadd.f32 %v2012, %v2106
      %v2142 = vadd.f32 %v2013, %v2109
      %v2143 = vadd.f32 %v2014, %v2111
      %v2144 = vadd.f32 %v2015, %v2114
      %v2145 = vadd.f32 %v2016, %v2116
      %v2146 = vadd.f32 %v2017, %v2119
      %v2147 = vadd.f32 %v2018, %v2121
      %v2148 = vadd.f32 %v2019, %v2124
      %v2149 = vadd.f32 %v2020, %v2126
      %v2150 = vadd.f32 %v2021, %v2129
      %v2151 = vadd.f32 %v2022, %v2131
      %v2152 = vadd.f32 %v2023, %v2134
      %v2153 = vadd.f32 %v2024, %v2136
      %v2155 = vshrl.u32 %v1452, 16
      %v2157 = vshll.u32 %v1452, 16
      %v2159 = vrot.slane %v2157, 1
      %v2160 = vor.u32 %v2155, %v2159
      %v2162 = vshll.u32 %v1462, 16
      %v2164 = vrot.slane %v2162, 1
      %v2165 = vsel %vm1613, %v2160, %v2164
      %v2167 = vld [vmem:[%s5 + $0x100] sm:$0xf]
      %v2168 = vld [vmem:[%s5 + $0x104] sm:$0xf]
      %v2169 = vld [vmem:[%s5 + $0x108] sm:$0xf]
      %v2170 = vld [vmem:[%s5 + $0x10c] sm:$0xf]
      %v2171 = vld [vmem:[%s5 + $0x110] sm:$0xf]
      %v2172 = vld [vmem:[%s5 + $0x114] sm:$0xf]
      %v2173 = vld [vmem:[%s5 + $0x118] sm:$0xf]
      %v2174 = vld [vmem:[%s5 + $0x11c] sm:$0xf]
      %v2175 = vld [vmem:[%s5 + $0x120] sm:$0xf]
      %v2176 = vld [vmem:[%s5 + $0x124] sm:$0xf]
      %v2177 = vld [vmem:[%s5 + $0x128] sm:$0xf]
      %v2178 = vld [vmem:[%s5 + $0x12c] sm:$0xf]
      %v2179 = vld [vmem:[%s5 + $0x130] sm:$0xf]
      %v2180 = vld [vmem:[%s5 + $0x134] sm:$0xf]
      %v2181 = vld [vmem:[%s5 + $0x138] sm:$0xf]
      %v2182 = vld [vmem:[%s5 + $0x13c] sm:$0xf]
      %v2199 = vunpack.c.l.b16 %v2167
      %v2200 = vunpack.c.l.b16 %v2168
      %v2201 = vunpack.c.l.b16 %v2169
      %v2202 = vunpack.c.l.b16 %v2170
      %v2203 = vunpack.c.l.b16 %v2171
      %v2204 = vunpack.c.l.b16 %v2172
      %v2205 = vunpack.c.l.b16 %v2173
      %v2206 = vunpack.c.l.b16 %v2174
      %v2207 = vunpack.c.l.b16 %v2175
      %v2208 = vunpack.c.l.b16 %v2176
      %v2209 = vunpack.c.l.b16 %v2177
      %v2210 = vunpack.c.l.b16 %v2178
      %v2211 = vunpack.c.l.b16 %v2179
      %v2212 = vunpack.c.l.b16 %v2180
      %v2213 = vunpack.c.l.b16 %v2181
      %v2214 = vunpack.c.l.b16 %v2182
      %v2215 = vpack.c.b16 %v2200, %v2199
      %v2216 = vpack.c.b16 %v2202, %v2201
      %v2217 = vpack.c.b16 %v2204, %v2203
      %v2218 = vpack.c.b16 %v2206, %v2205
      %v2219 = vpack.c.b16 %v2208, %v2207
      %v2220 = vpack.c.b16 %v2210, %v2209
      %v2221 = vpack.c.b16 %v2212, %v2211
      %v2222 = vpack.c.b16 %v2214, %v2213
      %2231 = vmatpush.bf16.msra.mxu0 %v2222
      %2232 = vmatpush.bf16.msra.mxu0 %v2221
      %2233 = vmatpush.bf16.msra.mxu0 %v2220
      %2234 = vmatpush.bf16.msra.mxu0 %v2219
      %2235 = vmatpush.bf16.msra.mxu0 %v2218
      %2236 = vmatpush.bf16.msra.mxu0 %v2217
      %2237 = vmatpush.bf16.msra.mxu0 %v2216
      %2238 = vmatpush.bf16.msra.mxu0 %v2215
      %2239 = vmatmul.bf16.gmra.mxu0 %v1637
      %v2240 = vpop.f32.mrf.mxu0
      %v2241 = vadd.f32 0.0, %v2240
      %v2242 = vpop.f32.mrf.mxu0
      %v2243 = vadd.f32 0.0, %v2242
      %2244 = vmatmul.bf16.gmra.mxu0 %v1649
      %v2245 = vpop.f32.mrf.mxu0
      %v2246 = vadd.f32 0.0, %v2245
      %v2247 = vpop.f32.mrf.mxu0
      %v2248 = vadd.f32 0.0, %v2247
      %2249 = vmatmul.bf16.gmra.mxu0 %v1661
      %v2250 = vpop.f32.mrf.mxu0
      %v2251 = vadd.f32 0.0, %v2250
      %v2252 = vpop.f32.mrf.mxu0
      %v2253 = vadd.f32 0.0, %v2252
      %2254 = vmatmul.bf16.gmra.mxu0 %v1673
      %v2255 = vpop.f32.mrf.mxu0
      %v2256 = vadd.f32 0.0, %v2255
      %v2257 = vpop.f32.mrf.mxu0
      %v2258 = vadd.f32 0.0, %v2257
      %2259 = vmatmul.bf16.gmra.mxu0 %v1685
      %v2260 = vpop.f32.mrf.mxu0
      %v2261 = vadd.f32 0.0, %v2260
      %v2262 = vpop.f32.mrf.mxu0
      %v2263 = vadd.f32 0.0, %v2262
      %2264 = vmatmul.bf16.gmra.mxu0 %v1697
      %v2265 = vpop.f32.mrf.mxu0
      %v2266 = vadd.f32 0.0, %v2265
      %v2267 = vpop.f32.mrf.mxu0
      %v2268 = vadd.f32 0.0, %v2267
      %2269 = vmatmul.bf16.gmra.mxu0 %v1709
      %v2270 = vpop.f32.mrf.mxu0
      %v2271 = vadd.f32 0.0, %v2270
      %v2272 = vpop.f32.mrf.mxu0
      %v2273 = vadd.f32 0.0, %v2272
      %2274 = vmatmul.bf16.gmra.mxu0 %v2165
      %v2275 = vpop.f32.mrf.mxu0
      %v2276 = vadd.f32 0.0, %v2275
      %v2277 = vpop.f32.mrf.mxu0
      %v2278 = vadd.f32 0.0, %v2277
      %2279 = vdwg.mxu0
      %v2280 = vadd.f32 %v2138, %v2241
      %v2281 = vadd.f32 %v2139, %v2243
      %v2282 = vadd.f32 %v2140, %v2246
      %v2283 = vadd.f32 %v2141, %v2248
      %v2284 = vadd.f32 %v2142, %v2251
      %v2285 = vadd.f32 %v2143, %v2253
      %v2286 = vadd.f32 %v2144, %v2256
      %v2287 = vadd.f32 %v2145, %v2258
      %v2288 = vadd.f32 %v2146, %v2261
      %v2289 = vadd.f32 %v2147, %v2263
      %v2290 = vadd.f32 %v2148, %v2266
      %v2291 = vadd.f32 %v2149, %v2268
      %v2292 = vadd.f32 %v2150, %v2271
      %v2293 = vadd.f32 %v2151, %v2273
      %v2294 = vadd.f32 %v2152, %v2276
      %v2295 = vadd.f32 %v2153, %v2278
      %v2298 = vrot.slane %v1452, 1
      %v2299 = vrot.slane %v1462, 1
      %v2300 = vsel %vm1863, %v2298, %v2299
      %v2302 = vld [vmem:[%s5 + $0x140] sm:$0xf]
      %v2303 = vld [vmem:[%s5 + $0x144] sm:$0xf]
      %v2304 = vld [vmem:[%s5 + $0x148] sm:$0xf]
      %v2305 = vld [vmem:[%s5 + $0x14c] sm:$0xf]
      %v2306 = vld [vmem:[%s5 + $0x150] sm:$0xf]
      %v2307 = vld [vmem:[%s5 + $0x154] sm:$0xf]
      %v2308 = vld [vmem:[%s5 + $0x158] sm:$0xf]
      %v2309 = vld [vmem:[%s5 + $0x15c] sm:$0xf]
      %v2310 = vld [vmem:[%s5 + $0x160] sm:$0xf]
      %v2311 = vld [vmem:[%s5 + $0x164] sm:$0xf]
      %v2312 = vld [vmem:[%s5 + $0x168] sm:$0xf]
      %v2313 = vld [vmem:[%s5 + $0x16c] sm:$0xf]
      %v2314 = vld [vmem:[%s5 + $0x170] sm:$0xf]
      %v2315 = vld [vmem:[%s5 + $0x174] sm:$0xf]
      %v2316 = vld [vmem:[%s5 + $0x178] sm:$0xf]
      %v2317 = vld [vmem:[%s5 + $0x17c] sm:$0xf]
      %v2334 = vunpack.c.l.b16 %v2302
      %v2335 = vunpack.c.l.b16 %v2303
      %v2336 = vunpack.c.l.b16 %v2304
      %v2337 = vunpack.c.l.b16 %v2305
      %v2338 = vunpack.c.l.b16 %v2306
      %v2339 = vunpack.c.l.b16 %v2307
      %v2340 = vunpack.c.l.b16 %v2308
      %v2341 = vunpack.c.l.b16 %v2309
      %v2342 = vunpack.c.l.b16 %v2310
      %v2343 = vunpack.c.l.b16 %v2311
      %v2344 = vunpack.c.l.b16 %v2312
      %v2345 = vunpack.c.l.b16 %v2313
      %v2346 = vunpack.c.l.b16 %v2314
      %v2347 = vunpack.c.l.b16 %v2315
      %v2348 = vunpack.c.l.b16 %v2316
      %v2349 = vunpack.c.l.b16 %v2317
      %v2350 = vpack.c.b16 %v2335, %v2334
      %v2351 = vpack.c.b16 %v2337, %v2336
      %v2352 = vpack.c.b16 %v2339, %v2338
      %v2353 = vpack.c.b16 %v2341, %v2340
      %v2354 = vpack.c.b16 %v2343, %v2342
      %v2355 = vpack.c.b16 %v2345, %v2344
      %v2356 = vpack.c.b16 %v2347, %v2346
      %v2357 = vpack.c.b16 %v2349, %v2348
      %2366 = vmatpush.bf16.msra.mxu0 %v2357
      %2367 = vmatpush.bf16.msra.mxu0 %v2356
      %2368 = vmatpush.bf16.msra.mxu0 %v2355
      %2369 = vmatpush.bf16.msra.mxu0 %v2354
      %2370 = vmatpush.bf16.msra.mxu0 %v2353
      %2371 = vmatpush.bf16.msra.mxu0 %v2352
      %2372 = vmatpush.bf16.msra.mxu0 %v2351
      %2373 = vmatpush.bf16.msra.mxu0 %v2350
      %2374 = vmatmul.bf16.gmra.mxu0 %v1869
      %v2375 = vpop.f32.mrf.mxu0
      %v2376 = vadd.f32 0.0, %v2375
      %v2377 = vpop.f32.mrf.mxu0
      %v2378 = vadd.f32 0.0, %v2377
      %2379 = vmatmul.bf16.gmra.mxu0 %v1872
      %v2380 = vpop.f32.mrf.mxu0
      %v2381 = vadd.f32 0.0, %v2380
      %v2382 = vpop.f32.mrf.mxu0
      %v2383 = vadd.f32 0.0, %v2382
      %2384 = vmatmul.bf16.gmra.mxu0 %v1875
      %v2385 = vpop.f32.mrf.mxu0
      %v2386 = vadd.f32 0.0, %v2385
      %v2387 = vpop.f32.mrf.mxu0
      %v2388 = vadd.f32 0.0, %v2387
      %2389 = vmatmul.bf16.gmra.mxu0 %v1878
      %v2390 = vpop.f32.mrf.mxu0
      %v2391 = vadd.f32 0.0, %v2390
      %v2392 = vpop.f32.mrf.mxu0
      %v2393 = vadd.f32 0.0, %v2392
      %2394 = vmatmul.bf16.gmra.mxu0 %v1881
      %v2395 = vpop.f32.mrf.mxu0
      %v2396 = vadd.f32 0.0, %v2395
      %v2397 = vpop.f32.mrf.mxu0
      %v2398 = vadd.f32 0.0, %v2397
      %2399 = vmatmul.bf16.gmra.mxu0 %v1884
      %v2400 = vpop.f32.mrf.mxu0
      %v2401 = vadd.f32 0.0, %v2400
      %v2402 = vpop.f32.mrf.mxu0
      %v2403 = vadd.f32 0.0, %v2402
      %2404 = vmatmul.bf16.gmra.mxu0 %v1887
      %v2405 = vpop.f32.mrf.mxu0
      %v2406 = vadd.f32 0.0, %v2405
      %v2407 = vpop.f32.mrf.mxu0
      %v2408 = vadd.f32 0.0, %v2407
      %2409 = vmatmul.bf16.gmra.mxu0 %v2300
      %v2410 = vpop.f32.mrf.mxu0
      %v2411 = vadd.f32 0.0, %v2410
      %v2412 = vpop.f32.mrf.mxu0
      %v2413 = vadd.f32 0.0, %v2412
      %2414 = vdwg.mxu0
      %v2415 = vadd.f32 %v2280, %v2376
      %v2416 = vadd.f32 %v2281, %v2378
      %v2417 = vadd.f32 %v2282, %v2381
      %v2418 = vadd.f32 %v2283, %v2383
      %v2419 = vadd.f32 %v2284, %v2386
      %v2420 = vadd.f32 %v2285, %v2388
      %v2421 = vadd.f32 %v2286, %v2391
      %v2422 = vadd.f32 %v2287, %v2393
      %v2423 = vadd.f32 %v2288, %v2396
      %v2424 = vadd.f32 %v2289, %v2398
      %v2425 = vadd.f32 %v2290, %v2401
      %v2426 = vadd.f32 %v2291, %v2403
      %v2427 = vadd.f32 %v2292, %v2406
      %v2428 = vadd.f32 %v2293, %v2408
      %v2429 = vadd.f32 %v2294, %v2411
      %v2430 = vadd.f32 %v2295, %v2413
      %v2431 = vld [vmem:[%s5 + $0x180] sm:$0xf]
      %v2432 = vld [vmem:[%s5 + $0x184] sm:$0xf]
      %v2433 = vld [vmem:[%s5 + $0x188] sm:$0xf]
      %v2434 = vld [vmem:[%s5 + $0x18c] sm:$0xf]
      %v2435 = vld [vmem:[%s5 + $0x190] sm:$0xf]
      %v2436 = vld [vmem:[%s5 + $0x194] sm:$0xf]
      %v2437 = vld [vmem:[%s5 + $0x198] sm:$0xf]
      %v2438 = vld [vmem:[%s5 + $0x19c] sm:$0xf]
      %v2439 = vld [vmem:[%s5 + $0x1a0] sm:$0xf]
      %v2440 = vld [vmem:[%s5 + $0x1a4] sm:$0xf]
      %v2441 = vld [vmem:[%s5 + $0x1a8] sm:$0xf]
      %v2442 = vld [vmem:[%s5 + $0x1ac] sm:$0xf]
      %v2443 = vld [vmem:[%s5 + $0x1b0] sm:$0xf]
      %v2444 = vld [vmem:[%s5 + $0x1b4] sm:$0xf]
      %v2445 = vld [vmem:[%s5 + $0x1b8] sm:$0xf]
      %v2446 = vld [vmem:[%s5 + $0x1bc] sm:$0xf]
      %v2463 = vunpack.c.l.b16 %v2431
      %v2464 = vunpack.c.l.b16 %v2432
      %v2465 = vunpack.c.l.b16 %v2433
      %v2466 = vunpack.c.l.b16 %v2434
      %v2467 = vunpack.c.l.b16 %v2435
      %v2468 = vunpack.c.l.b16 %v2436
      %v2469 = vunpack.c.l.b16 %v2437
      %v2470 = vunpack.c.l.b16 %v2438
      %v2471 = vunpack.c.l.b16 %v2439
      %v2472 = vunpack.c.l.b16 %v2440
      %v2473 = vunpack.c.l.b16 %v2441
      %v2474 = vunpack.c.l.b16 %v2442
      %v2475 = vunpack.c.l.b16 %v2443
      %v2476 = vunpack.c.l.b16 %v2444
      %v2477 = vunpack.c.l.b16 %v2445
      %v2478 = vunpack.c.l.b16 %v2446
      %v2479 = vpack.c.b16 %v2464, %v2463
      %v2480 = vpack.c.b16 %v2466, %v2465
      %v2481 = vpack.c.b16 %v2468, %v2467
      %v2482 = vpack.c.b16 %v2470, %v2469
      %v2483 = vpack.c.b16 %v2472, %v2471
      %v2484 = vpack.c.b16 %v2474, %v2473
      %v2485 = vpack.c.b16 %v2476, %v2475
      %v2486 = vpack.c.b16 %v2478, %v2477
      %2495 = vmatpush.bf16.msra.mxu0 %v2486
      %2496 = vmatpush.bf16.msra.mxu0 %v2485
      %2497 = vmatpush.bf16.msra.mxu0 %v2484
      %2498 = vmatpush.bf16.msra.mxu0 %v2483
      %2499 = vmatpush.bf16.msra.mxu0 %v2482
      %2500 = vmatpush.bf16.msra.mxu0 %v2481
      %2501 = vmatpush.bf16.msra.mxu0 %v2480
      %2502 = vmatpush.bf16.msra.mxu0 %v2479
      %2503 = vmatmul.bf16.gmra.mxu0 %v1446
      %v2504 = vpop.f32.mrf.mxu0
      %v2505 = vadd.f32 0.0, %v2504
      %v2506 = vpop.f32.mrf.mxu0
      %v2507 = vadd.f32 0.0, %v2506
      %2508 = vmatmul.bf16.gmra.mxu0 %v1447
      %v2509 = vpop.f32.mrf.mxu0
      %v2510 = vadd.f32 0.0, %v2509
      %v2511 = vpop.f32.mrf.mxu0
      %v2512 = vadd.f32 0.0, %v2511
      %2513 = vmatmul.bf16.gmra.mxu0 %v1448
      %v2514 = vpop.f32.mrf.mxu0
      %v2515 = vadd.f32 0.0, %v2514
      %v2516 = vpop.f32.mrf.mxu0
      %v2517 = vadd.f32 0.0, %v2516
      %2518 = vmatmul.bf16.gmra.mxu0 %v1449
      %v2519 = vpop.f32.mrf.mxu0
      %v2520 = vadd.f32 0.0, %v2519
      %v2521 = vpop.f32.mrf.mxu0
      %v2522 = vadd.f32 0.0, %v2521
      %2523 = vmatmul.bf16.gmra.mxu0 %v1450
      %v2524 = vpop.f32.mrf.mxu0
      %v2525 = vadd.f32 0.0, %v2524
      %v2526 = vpop.f32.mrf.mxu0
      %v2527 = vadd.f32 0.0, %v2526
      %2528 = vmatmul.bf16.gmra.mxu0 %v1451
      %v2529 = vpop.f32.mrf.mxu0
      %v2530 = vadd.f32 0.0, %v2529
      %v2531 = vpop.f32.mrf.mxu0
      %v2532 = vadd.f32 0.0, %v2531
      %2533 = vmatmul.bf16.gmra.mxu0 %v1452
      %v2534 = vpop.f32.mrf.mxu0
      %v2535 = vadd.f32 0.0, %v2534
      %v2536 = vpop.f32.mrf.mxu0
      %v2537 = vadd.f32 0.0, %v2536
      %2538 = vmatmul.bf16.gmra.mxu0 %v1453
      %v2539 = vpop.f32.mrf.mxu0
      %v2540 = vadd.f32 0.0, %v2539
      %v2541 = vpop.f32.mrf.mxu0
      %v2542 = vadd.f32 0.0, %v2541
      %2543 = vdwg.mxu0
      %v2544 = vadd.f32 %v2415, %v2505
      %v2545 = vadd.f32 %v2416, %v2507
      %v2546 = vadd.f32 %v2417, %v2510
      %v2547 = vadd.f32 %v2418, %v2512
      %v2548 = vadd.f32 %v2419, %v2515
      %v2549 = vadd.f32 %v2420, %v2517
      %v2550 = vadd.f32 %v2421, %v2520
      %v2551 = vadd.f32 %v2422, %v2522
      %v2552 = vadd.f32 %v2423, %v2525
      %v2553 = vadd.f32 %v2424, %v2527
      %v2554 = vadd.f32 %v2425, %v2530
      %v2555 = vadd.f32 %v2426, %v2532
      %v2556 = vadd.f32 %v2427, %v2535
      %v2557 = vadd.f32 %v2428, %v2537
      %v2558 = vadd.f32 %v2429, %v2540
      %v2559 = vadd.f32 %v2430, %v2542
      %v2561 = vshrl.u32 %v1453, 16
      %v2563 = vshll.u32 %v1453, 16
      %v2565 = vrot.slane %v2563, 1
      %v2566 = vor.u32 %v2561, %v2565
      %v2568 = vshll.u32 %v1463, 16
      %v2570 = vrot.slane %v2568, 1
      %v2571 = vsel %vm1613, %v2566, %v2570
      %v2573 = vld [vmem:[%s5 + $0x1c0] sm:$0xf]
      %v2574 = vld [vmem:[%s5 + $0x1c4] sm:$0xf]
      %v2575 = vld [vmem:[%s5 + $0x1c8] sm:$0xf]
      %v2576 = vld [vmem:[%s5 + $0x1cc] sm:$0xf]
      %v2577 = vld [vmem:[%s5 + $0x1d0] sm:$0xf]
      %v2578 = vld [vmem:[%s5 + $0x1d4] sm:$0xf]
      %v2579 = vld [vmem:[%s5 + $0x1d8] sm:$0xf]
      %v2580 = vld [vmem:[%s5 + $0x1dc] sm:$0xf]
      %v2581 = vld [vmem:[%s5 + $0x1e0] sm:$0xf]
      %v2582 = vld [vmem:[%s5 + $0x1e4] sm:$0xf]
      %v2583 = vld [vmem:[%s5 + $0x1e8] sm:$0xf]
      %v2584 = vld [vmem:[%s5 + $0x1ec] sm:$0xf]
      %v2585 = vld [vmem:[%s5 + $0x1f0] sm:$0xf]
      %v2586 = vld [vmem:[%s5 + $0x1f4] sm:$0xf]
      %v2587 = vld [vmem:[%s5 + $0x1f8] sm:$0xf]
      %v2588 = vld [vmem:[%s5 + $0x1fc] sm:$0xf]
      %v2605 = vunpack.c.l.b16 %v2573
      %v2606 = vunpack.c.l.b16 %v2574
      %v2607 = vunpack.c.l.b16 %v2575
      %v2608 = vunpack.c.l.b16 %v2576
      %v2609 = vunpack.c.l.b16 %v2577
      %v2610 = vunpack.c.l.b16 %v2578
      %v2611 = vunpack.c.l.b16 %v2579
      %v2612 = vunpack.c.l.b16 %v2580
      %v2613 = vunpack.c.l.b16 %v2581
      %v2614 = vunpack.c.l.b16 %v2582
      %v2615 = vunpack.c.l.b16 %v2583
      %v2616 = vunpack.c.l.b16 %v2584
      %v2617 = vunpack.c.l.b16 %v2585
      %v2618 = vunpack.c.l.b16 %v2586
      %v2619 = vunpack.c.l.b16 %v2587
      %v2620 = vunpack.c.l.b16 %v2588
      %v2621 = vpack.c.b16 %v2606, %v2605
      %v2622 = vpack.c.b16 %v2608, %v2607
      %v2623 = vpack.c.b16 %v2610, %v2609
      %v2624 = vpack.c.b16 %v2612, %v2611
      %v2625 = vpack.c.b16 %v2614, %v2613
      %v2626 = vpack.c.b16 %v2616, %v2615
      %v2627 = vpack.c.b16 %v2618, %v2617
      %v2628 = vpack.c.b16 %v2620, %v2619
      %2637 = vmatpush.bf16.msra.mxu0 %v2628
      %2638 = vmatpush.bf16.msra.mxu0 %v2627
      %2639 = vmatpush.bf16.msra.mxu0 %v2626
      %2640 = vmatpush.bf16.msra.mxu0 %v2625
      %2641 = vmatpush.bf16.msra.mxu0 %v2624
      %2642 = vmatpush.bf16.msra.mxu0 %v2623
      %2643 = vmatpush.bf16.msra.mxu0 %v2622
      %2644 = vmatpush.bf16.msra.mxu0 %v2621
      %2645 = vmatmul.bf16.gmra.mxu0 %v1649
      %v2646 = vpop.f32.mrf.mxu0
      %v2647 = vadd.f32 0.0, %v2646
      %v2648 = vpop.f32.mrf.mxu0
      %v2649 = vadd.f32 0.0, %v2648
      %2650 = vmatmul.bf16.gmra.mxu0 %v1661
      %v2651 = vpop.f32.mrf.mxu0
      %v2652 = vadd.f32 0.0, %v2651
      %v2653 = vpop.f32.mrf.mxu0
      %v2654 = vadd.f32 0.0, %v2653
      %2655 = vmatmul.bf16.gmra.mxu0 %v1673
      %v2656 = vpop.f32.mrf.mxu0
      %v2657 = vadd.f32 0.0, %v2656
      %v2658 = vpop.f32.mrf.mxu0
      %v2659 = vadd.f32 0.0, %v2658
      %2660 = vmatmul.bf16.gmra.mxu0 %v1685
      %v2661 = vpop.f32.mrf.mxu0
      %v2662 = vadd.f32 0.0, %v2661
      %v2663 = vpop.f32.mrf.mxu0
      %v2664 = vadd.f32 0.0, %v2663
      %2665 = vmatmul.bf16.gmra.mxu0 %v1697
      %v2666 = vpop.f32.mrf.mxu0
      %v2667 = vadd.f32 0.0, %v2666
      %v2668 = vpop.f32.mrf.mxu0
      %v2669 = vadd.f32 0.0, %v2668
      %2670 = vmatmul.bf16.gmra.mxu0 %v1709
      %v2671 = vpop.f32.mrf.mxu0
      %v2672 = vadd.f32 0.0, %v2671
      %v2673 = vpop.f32.mrf.mxu0
      %v2674 = vadd.f32 0.0, %v2673
      %2675 = vmatmul.bf16.gmra.mxu0 %v2165
      %v2676 = vpop.f32.mrf.mxu0
      %v2677 = vadd.f32 0.0, %v2676
      %v2678 = vpop.f32.mrf.mxu0
      %v2679 = vadd.f32 0.0, %v2678
      %2680 = vmatmul.bf16.gmra.mxu0 %v2571
      %v2681 = vpop.f32.mrf.mxu0
      %v2682 = vadd.f32 0.0, %v2681
      %v2683 = vpop.f32.mrf.mxu0
      %v2684 = vadd.f32 0.0, %v2683
      %2685 = vdwg.mxu0
      %v2686 = vadd.f32 %v2544, %v2647
      %v2687 = vadd.f32 %v2545, %v2649
      %v2688 = vadd.f32 %v2546, %v2652
      %v2689 = vadd.f32 %v2547, %v2654
      %v2690 = vadd.f32 %v2548, %v2657
      %v2691 = vadd.f32 %v2549, %v2659
      %v2692 = vadd.f32 %v2550, %v2662
      %v2693 = vadd.f32 %v2551, %v2664
      %v2694 = vadd.f32 %v2552, %v2667
      %v2695 = vadd.f32 %v2553, %v2669
      %v2696 = vadd.f32 %v2554, %v2672
      %v2697 = vadd.f32 %v2555, %v2674
      %v2698 = vadd.f32 %v2556, %v2677
      %v2699 = vadd.f32 %v2557, %v2679
      %v2700 = vadd.f32 %v2558, %v2682
      %v2701 = vadd.f32 %v2559, %v2684
      %v2704 = vrot.slane %v1453, 1
      %v2705 = vrot.slane %v1463, 1
      %v2706 = vsel %vm1863, %v2704, %v2705
      %v2708 = vld [vmem:[%s5 + $0x200] sm:$0xf]
      %v2709 = vld [vmem:[%s5 + $0x204] sm:$0xf]
      %v2710 = vld [vmem:[%s5 + $0x208] sm:$0xf]
      %v2711 = vld [vmem:[%s5 + $0x20c] sm:$0xf]
      %v2712 = vld [vmem:[%s5 + $0x210] sm:$0xf]
      %v2713 = vld [vmem:[%s5 + $0x214] sm:$0xf]
      %v2714 = vld [vmem:[%s5 + $0x218] sm:$0xf]
      %v2715 = vld [vmem:[%s5 + $0x21c] sm:$0xf]
      %v2716 = vld [vmem:[%s5 + $0x220] sm:$0xf]
      %v2717 = vld [vmem:[%s5 + $0x224] sm:$0xf]
      %v2718 = vld [vmem:[%s5 + $0x228] sm:$0xf]
      %v2719 = vld [vmem:[%s5 + $0x22c] sm:$0xf]
      %v2720 = vld [vmem:[%s5 + $0x230] sm:$0xf]
      %v2721 = vld [vmem:[%s5 + $0x234] sm:$0xf]
      %v2722 = vld [vmem:[%s5 + $0x238] sm:$0xf]
      %v2723 = vld [vmem:[%s5 + $0x23c] sm:$0xf]
      %v2740 = vunpack.c.l.b16 %v2708
      %v2741 = vunpack.c.l.b16 %v2709
      %v2742 = vunpack.c.l.b16 %v2710
      %v2743 = vunpack.c.l.b16 %v2711
      %v2744 = vunpack.c.l.b16 %v2712
      %v2745 = vunpack.c.l.b16 %v2713
      %v2746 = vunpack.c.l.b16 %v2714
      %v2747 = vunpack.c.l.b16 %v2715
      %v2748 = vunpack.c.l.b16 %v2716
      %v2749 = vunpack.c.l.b16 %v2717
      %v2750 = vunpack.c.l.b16 %v2718
      %v2751 = vunpack.c.l.b16 %v2719
      %v2752 = vunpack.c.l.b16 %v2720
      %v2753 = vunpack.c.l.b16 %v2721
      %v2754 = vunpack.c.l.b16 %v2722
      %v2755 = vunpack.c.l.b16 %v2723
      %v2756 = vpack.c.b16 %v2741, %v2740
      %v2757 = vpack.c.b16 %v2743, %v2742
      %v2758 = vpack.c.b16 %v2745, %v2744
      %v2759 = vpack.c.b16 %v2747, %v2746
      %v2760 = vpack.c.b16 %v2749, %v2748
      %v2761 = vpack.c.b16 %v2751, %v2750
      %v2762 = vpack.c.b16 %v2753, %v2752
      %v2763 = vpack.c.b16 %v2755, %v2754
      %2772 = vmatpush.bf16.msra.mxu0 %v2763
      %2773 = vmatpush.bf16.msra.mxu0 %v2762
      %2774 = vmatpush.bf16.msra.mxu0 %v2761
      %2775 = vmatpush.bf16.msra.mxu0 %v2760
      %2776 = vmatpush.bf16.msra.mxu0 %v2759
      %2777 = vmatpush.bf16.msra.mxu0 %v2758
      %2778 = vmatpush.bf16.msra.mxu0 %v2757
      %2779 = vmatpush.bf16.msra.mxu0 %v2756
      %2780 = vmatmul.bf16.gmra.mxu0 %v1872
      %v2781 = vpop.f32.mrf.mxu0
      %v2782 = vadd.f32 0.0, %v2781
      %v2783 = vpop.f32.mrf.mxu0
      %v2784 = vadd.f32 0.0, %v2783
      %2785 = vmatmul.bf16.gmra.mxu0 %v1875
      %v2786 = vpop.f32.mrf.mxu0
      %v2787 = vadd.f32 0.0, %v2786
      %v2788 = vpop.f32.mrf.mxu0
      %v2789 = vadd.f32 0.0, %v2788
      %2790 = vmatmul.bf16.gmra.mxu0 %v1878
      %v2791 = vpop.f32.mrf.mxu0
      %v2792 = vadd.f32 0.0, %v2791
      %v2793 = vpop.f32.mrf.mxu0
      %v2794 = vadd.f32 0.0, %v2793
      %2795 = vmatmul.bf16.gmra.mxu0 %v1881
      %v2796 = vpop.f32.mrf.mxu0
      %v2797 = vadd.f32 0.0, %v2796
      %v2798 = vpop.f32.mrf.mxu0
      %v2799 = vadd.f32 0.0, %v2798
      %2800 = vmatmul.bf16.gmra.mxu0 %v1884
      %v2801 = vpop.f32.mrf.mxu0
      %v2802 = vadd.f32 0.0, %v2801
      %v2803 = vpop.f32.mrf.mxu0
      %v2804 = vadd.f32 0.0, %v2803
      %2805 = vmatmul.bf16.gmra.mxu0 %v1887
      %v2806 = vpop.f32.mrf.mxu0
      %v2807 = vadd.f32 0.0, %v2806
      %v2808 = vpop.f32.mrf.mxu0
      %v2809 = vadd.f32 0.0, %v2808
      %2810 = vmatmul.bf16.gmra.mxu0 %v2300
      %v2811 = vpop.f32.mrf.mxu0
      %v2812 = vadd.f32 0.0, %v2811
      %v2813 = vpop.f32.mrf.mxu0
      %v2814 = vadd.f32 0.0, %v2813
      %2815 = vmatmul.bf16.gmra.mxu0 %v2706
      %v2816 = vpop.f32.mrf.mxu0
      %v2817 = vadd.f32 0.0, %v2816
      %v2818 = vpop.f32.mrf.mxu0
      %v2819 = vadd.f32 0.0, %v2818
      %2820 = vdwg.mxu0
      %v2821 = vadd.f32 %v2686, %v2782
      %v2822 = vadd.f32 %v2687, %v2784
      %v2823 = vadd.f32 %v2688, %v2787
      %v2824 = vadd.f32 %v2689, %v2789
      %v2825 = vadd.f32 %v2690, %v2792
      %v2826 = vadd.f32 %v2691, %v2794
      %v2827 = vadd.f32 %v2692, %v2797
      %v2828 = vadd.f32 %v2693, %v2799
      %v2829 = vadd.f32 %v2694, %v2802
      %v2830 = vadd.f32 %v2695, %v2804
      %v2831 = vadd.f32 %v2696, %v2807
      %v2832 = vadd.f32 %v2697, %v2809
      %v2833 = vadd.f32 %v2698, %v2812
      %v2834 = vadd.f32 %v2699, %v2814
      %v2835 = vadd.f32 %v2700, %v2817
      %v2836 = vadd.f32 %v2701, %v2819
      %v2837 = vsub.f32 0.0, %v2821
      %v2838 = vsub.f32 0.0, %v2822
      %v2839 = vsub.f32 0.0, %v2823
      %v2840 = vsub.f32 0.0, %v2824
      %v2841 = vsub.f32 0.0, %v2825
      %v2842 = vsub.f32 0.0, %v2826
      %v2843 = vsub.f32 0.0, %v2827
      %v2844 = vsub.f32 0.0, %v2828
      %v2845 = vsub.f32 0.0, %v2829
      %v2846 = vsub.f32 0.0, %v2830
      %v2847 = vsub.f32 0.0, %v2831
      %v2848 = vsub.f32 0.0, %v2832
      %v2849 = vsub.f32 0.0, %v2833
      %v2850 = vsub.f32 0.0, %v2834
      %v2851 = vsub.f32 0.0, %v2835
      %v2852 = vsub.f32 0.0, %v2836
      %v2853 = vmul.f32 %v2837, 1.442695
      %v2854 = vpow.pop %v2853
      %v2855 = vmul.f32 %v2838, 1.442695
      %v2856 = vpow.pop %v2855
      %v2857 = vmul.f32 %v2839, 1.442695
      %v2858 = vpow.pop %v2857
      %v2859 = vmul.f32 %v2840, 1.442695
      %v2860 = vpow.pop %v2859
      %v2861 = vmul.f32 %v2841, 1.442695
      %v2862 = vpow.pop %v2861
      %v2863 = vmul.f32 %v2842, 1.442695
      %v2864 = vpow.pop %v2863
      %v2865 = vmul.f32 %v2843, 1.442695
      %v2866 = vpow.pop %v2865
      %v2867 = vmul.f32 %v2844, 1.442695
      %v2868 = vpow.pop %v2867
      %v2869 = vmul.f32 %v2845, 1.442695
      %v2870 = vpow.pop %v2869
      %v2871 = vmul.f32 %v2846, 1.442695
      %v2872 = vpow.pop %v2871
      %v2873 = vmul.f32 %v2847, 1.442695
      %v2874 = vpow.pop %v2873
      %v2875 = vmul.f32 %v2848, 1.442695
      %v2876 = vpow.pop %v2875
      %v2877 = vmul.f32 %v2849, 1.442695
      %v2878 = vpow.pop %v2877
      %v2879 = vmul.f32 %v2850, 1.442695
      %v2880 = vpow.pop %v2879
      %v2881 = vmul.f32 %v2851, 1.442695
      %v2882 = vpow.pop %v2881
      %v2883 = vmul.f32 %v2852, 1.442695
      %v2884 = vpow.pop %v2883
      %v2885 = vadd.f32 %v2854, 1.0
      %v2886 = vadd.f32 %v2856, 1.0
      %v2887 = vadd.f32 %v2858, 1.0
      %v2888 = vadd.f32 %v2860, 1.0
      %v2889 = vadd.f32 %v2862, 1.0
      %v2890 = vadd.f32 %v2864, 1.0
      %v2891 = vadd.f32 %v2866, 1.0
      %v2892 = vadd.f32 %v2868, 1.0
      %v2893 = vadd.f32 %v2870, 1.0
      %v2894 = vadd.f32 %v2872, 1.0
      %v2895 = vadd.f32 %v2874, 1.0
      %v2896 = vadd.f32 %v2876, 1.0
      %v2897 = vadd.f32 %v2878, 1.0
      %v2898 = vadd.f32 %v2880, 1.0
      %v2899 = vadd.f32 %v2882, 1.0
      %v2900 = vadd.f32 %v2884, 1.0
      %v2901 = vrcp.pop %v2885
      %v2902 = vrcp.pop %v2886
      %v2903 = vrcp.pop %v2887
      %v2904 = vrcp.pop %v2888
      %v2905 = vrcp.pop %v2889
      %v2906 = vrcp.pop %v2890
      %v2907 = vrcp.pop %v2891
      %v2908 = vrcp.pop %v2892
      %v2909 = vrcp.pop %v2893
      %v2910 = vrcp.pop %v2894
      %v2911 = vrcp.pop %v2895
      %v2912 = vrcp.pop %v2896
      %v2913 = vrcp.pop %v2897
      %v2914 = vrcp.pop %v2898
      %v2915 = vrcp.pop %v2899
      %v2916 = vrcp.pop %v2900
      %v2917 = vmul.f32 %v2821, %v2901
      %v2918 = vmul.f32 %v2822, %v2902
      %v2919 = vmul.f32 %v2823, %v2903
      %v2920 = vmul.f32 %v2824, %v2904
      %v2921 = vmul.f32 %v2825, %v2905
      %v2922 = vmul.f32 %v2826, %v2906
      %v2923 = vmul.f32 %v2827, %v2907
      %v2924 = vmul.f32 %v2828, %v2908
      %v2925 = vmul.f32 %v2829, %v2909
      %v2926 = vmul.f32 %v2830, %v2910
      %v2927 = vmul.f32 %v2831, %v2911
      %v2928 = vmul.f32 %v2832, %v2912
      %v2929 = vmul.f32 %v2833, %v2913
      %v2930 = vmul.f32 %v2834, %v2914
      %v2931 = vmul.f32 %v2835, %v2915
      %v2932 = vmul.f32 %v2836, %v2916
      %vm2933 = vcmask 64512
      %2934 = vst.msk [vmem:[%s445] sm:$0xff] %vm2933, %v2917
      %2935 = vst.msk [vmem:[%s445 + $0x8] sm:$0xff] %vm2933, %v2918
      %2936 = vst.msk [vmem:[%s445 + $0x10] sm:$0xff] %vm2933, %v2919
      %2937 = vst.msk [vmem:[%s445 + $0x18] sm:$0xff] %vm2933, %v2920
      %2938 = vst.msk [vmem:[%s445 + $0x20] sm:$0xff] %vm2933, %v2921
      %2939 = vst.msk [vmem:[%s445 + $0x28] sm:$0xff] %vm2933, %v2922
      %2940 = vst.msk [vmem:[%s445 + $0x30] sm:$0xff] %vm2933, %v2923
      %2941 = vst.msk [vmem:[%s445 + $0x38] sm:$0xff] %vm2933, %v2924
      %2942 = vst.msk [vmem:[%s445 + $0x40] sm:$0xff] %vm2933, %v2925
      %2943 = vst.msk [vmem:[%s445 + $0x48] sm:$0xff] %vm2933, %v2926
      %2944 = vst.msk [vmem:[%s445 + $0x50] sm:$0xff] %vm2933, %v2927
      %2945 = vst.msk [vmem:[%s445 + $0x58] sm:$0xff] %vm2933, %v2928
      %2946 = vst.msk [vmem:[%s445 + $0x60] sm:$0xff] %vm2933, %v2929
      %2947 = vst.msk [vmem:[%s445 + $0x68] sm:$0xff] %vm2933, %v2930
      %2948 = vst.msk [vmem:[%s445 + $0x70] sm:$0xff] %vm2933, %v2931
      %2949 = vst.msk [vmem:[%s445 + $0x78] sm:$0xff] %vm2933, %v2932
      %s2950 = smul.u32 8, %s23
      %p2951 = scmp.lt.s32.totalorder %s22, 1
      %s2952 = scalar_select %p2951, %s22, 1
      %p2953 = scmp.lt.s32.totalorder %s2950, 15
      %s2954 = scalar_select %p2953, %s2950, 15
      %s2955 = smul.addr %s2954, 2
      %s2956 = smul.addr %s2952, 32
      %s2957 = sadd.s32 %s2955, %s2956
      %s2958 = smul.addr %s2957, 8
      %s2959 = scalar_lea.vmem %s7, %s2958
      // Predicated region
      $region49: #{tpu_custom_call.1} parent=47 // pred_check
        %p2960 = pneg %p234
      $region50: #{tpu_custom_call.1} parent=47 // pred_check_branch
        %2962 = sbr.rel (%p2960) target = $region52
      $region51: #{tpu_custom_call.1} parent=47 // pred_region
        %s2963 = smul.u32 8, %s23
      $region52: #{tpu_custom_call.1} parent=47 // pred_fallthru
        _
    $region48: #{tpu_custom_call.1} parent=5 // pred_fallthru
      _
    %p2964 = scmp.le.s32.totalorder 2, %s13
    // Predicated region
    $region53: #{tpu_custom_call.1} parent=5 // pred_check
      %p2965 = pneg %p2964
    $region54: #{tpu_custom_call.1} parent=5 // pred_check_branch
      %2967 = sbr.rel (%p2965) target = $region56
    $region55: #{tpu_custom_call.1} parent=5 // pred_region
      %s2968 = ssub.s32 %s13, 2
      // Predicated region
      $region57: #{tpu_custom_call.1} parent=55 // pred_check
        %p2969 = pneg %p240
      $region58: #{tpu_custom_call.1} parent=55 // pred_check_branch
        %2971 = sbr.rel (%p2969) target = $region60
      $region59: #{tpu_custom_call.1} parent=55 // pred_region
        %s2972 = smul.u32 8, %s25
        %p2973 = scmp.lt.s32.totalorder %s24, 1
        %s2974 = scalar_select %p2973, %s24, 1
        %p2975 = scmp.lt.s32.totalorder %s2972, 15
        %s2976 = scalar_select %p2975, %s2972, 15
        %s2977 = smul.addr %s2976, 2
        %s2978 = smul.addr %s2974, 32
        %s2979 = sadd.s32 %s2977, %s2978
        %s2980 = smul.addr %s2979, 8
        %s2981 = scalar_lea.vmem %s7, %s2980
      $region60: #{tpu_custom_call.1} parent=55 // pred_fallthru
        _
    $region56: #{tpu_custom_call.1} parent=5 // pred_fallthru
      _
  $region6: #{tpu_custom_call.1} parent=0 // loop_footer
    %s17 = sadd.s32 1, %s13
  $region7: #{tpu_custom_call.1} parent=0 // loop_footer_branch
    %12 = sbr.rel target = $region3
  $region8: #{tpu_custom_call.1} parent=0 // loop_exit
    _

</llo_original>
